<compile_context>
chip_gen: v5e
topology: v5e:2x2
jax: 0.10.0
libtpu: 0.0.40
codegen_flags: <defaults>
</compile_context>

<pallas_src>
import functools

import jax
import jax.numpy as jnp
import numpy as np
from jax import lax
from jax.experimental import pallas as pl
from jax.experimental.pallas import tpu as pltpu


# --------------------------------------------------------------------------- #
# One-time constant construction (host / NumPy).  Depends only on the module
# parameters (filter, conv weight, ratio, C, H, W) -- not on the batch -- so it
# is built once and reused for every forward call.
# --------------------------------------------------------------------------- #
def build_fsa_constants(filt, wconv, ratio):
    filt = np.asarray(filt, np.float32)          # (C, H, W, 2)   agf.filter
    wconv = np.asarray(wconv, np.float32)        # (1, 2, 7, 7)   sa.conv1.weight
    C, H, W, _ = filt.shape
    HW = H * W

    # ---- frequency-domain multiplier M_c in natural (unshifted) freq order -----
    crow, ccol = H // 2, W // 2
    mask_low = np.zeros((H, W), np.float32)
    mask_low[crow - ratio:crow + ratio, ccol - ratio:ccol + ratio] = 1.0
    mask_high = 1.0 - mask_low
    weight = filt[..., 0] + 1j * filt[..., 1]                    # (C, H, W)
    m = mask_low * weight + mask_high                            # shifted domain
    m = np.fft.ifftshift(m, axes=(-2, -1))                       # natural order
    mr = np.ascontiguousarray(m.real).reshape(C, HW).astype(np.float32)
    mi = np.ascontiguousarray(m.imag).reshape(C, HW).astype(np.float32)

    # ---- dense 2-D DFT / IDFT matrices (kron of 1-D DFTs), real/imag fused ------
    def dft_factors(n):
        k = np.arange(n)
        ang = (2.0 * np.pi / n) * np.outer(k, k)
        c, s = np.cos(ang), np.sin(ang)
        return (c / np.sqrt(n), -s / np.sqrt(n),   # forward DFT, norm='ortho'
                c / n, s / n)                      # inverse DFT, norm='backward'

    fhr, fhi, ghr, ghi = dft_factors(H)
    fwr, fwi, gwr, gwi = dft_factors(W)
    dfr = np.kron(fhr, fwr) - np.kron(fhi, fwi)    # real(F_h (x) F_w)
    dfi = np.kron(fhr, fwi) + np.kron(fhi, fwr)    # imag(F_h (x) F_w)
    eir = np.kron(ghr, gwr) - np.kron(ghi, gwi)    # real(G_h (x) G_w)
    eii = np.kron(ghr, gwi) + np.kron(ghi, gwr)    # imag(G_h (x) G_w)
    # Fused operands: one matmul -> [Xr | Xi]; one matmul -> Re(IDFT([Yr | Yi])).
    dfc = np.concatenate([dfr.T, dfi.T], axis=1)   # (HW, 2*HW)
    eic = np.concatenate([eir.T, -eii.T], axis=0)  # (2*HW, HW)

    # ---- 7x7 zero-padded conv as one (2*HW, HW) banded matrix -------------------
    P = 3
    dh = np.arange(H)[:, None] - np.arange(H)[None, :]
    dw = np.arange(W)[:, None] - np.arange(W)[None, :]
    valid = ((np.abs(dh) <= P)[:, None, :, None]
             & (np.abs(dw) <= P)[None, :, None, :])
    ih = np.clip(dh + P, 0, 2 * P)
    iw = np.clip(dw + P, 0, 2 * P)

    def conv_matrix(wc):                           # (7, 7) -> (HW, HW)
        k = wc[ih[:, None, :, None], iw[None, :, None, :]]      # (H, W, H, W)
        return np.where(valid, k, 0.0).reshape(HW, HW)

    kcat = np.concatenate([conv_matrix(wconv[0, 0]),
                           conv_matrix(wconv[0, 1])], axis=0)    # (2*HW, HW)

    return dict(
        mr=jnp.asarray(mr),                                  # (C, HW) f32
        mi=jnp.asarray(mi),                                  # (C, HW) f32
        dfc=jnp.asarray(dfc, dtype=jnp.bfloat16),            # (HW, 2*HW)
        eic=jnp.asarray(eic, dtype=jnp.bfloat16),            # (2*HW, HW)
        kcat=jnp.asarray(kcat, dtype=jnp.bfloat16),          # (2*HW, HW)
    )


# --------------------------------------------------------------------------- #
# Fused kernel: adaptive global filter + spatial attention + add.
# Single invocation (no grid): everything lives in VMEM; M = B*C for the
# DFT/IDFT matmuls; all stores are lane-dense.
# --------------------------------------------------------------------------- #
def fsa_kernel(xs_ref, xa_ref, mr_ref, mi_ref, dfc_ref, eic_ref, kc_ref, o_ref,
               *, B, C, HW):
    f32, bf16 = jnp.float32, jnp.bfloat16

    # ---- Adaptive_global_filter on all B*C rows at once (M = B*C) --------------
    xa = xa_ref[...].astype(bf16)                                 # (B*C, HW)
    xc = jnp.dot(xa, dfc_ref[...], preferred_element_type=f32)    # (B*C, 2*HW) = [Xr|Xi]
    xr = xc[:, :HW]
    xi = xc[:, HW:]
    mr = mr_ref[...]
    mi = mi_ref[...]
    yr = xr * mr - xi * mi                                        # complex filter (f32, VPU)
    yi = xr * mi + xi * mr
    y = jnp.concatenate([yr, yi], axis=1).astype(bf16)            # (B*C, 2*HW)
    f_out = jnp.dot(y, eic_ref[...], preferred_element_type=f32)  # (B*C, HW) = Re(IDFT)
    o_ref[...] = f_out                                            # full unmasked store

    # ---- SpatialAttention gate, accumulated into the output per batch ----------
    for b in range(B):                                            # static unroll
        sl = slice(b * C, (b + 1) * C)
        blk = xs_ref[sl, :]                                       # (C, HW) f32
        avg = jnp.mean(blk, axis=0, keepdims=True)                # (1, HW)
        mx = jnp.max(blk, axis=0, keepdims=True)                  # (1, HW)
        maps = jnp.concatenate([avg, mx], axis=1).astype(bf16)    # (1, 2*HW)
        conv = jnp.dot(maps, kc_ref[...], preferred_element_type=f32)   # (1, HW)
        gate = jax.nn.sigmoid(conv)                               # f32 (EUP)
        o_ref[sl, :] = o_ref[sl, :] + blk * gate


# --------------------------------------------------------------------------- #
# Per-call wrapper: cheap layout plumbing + one pallas_call.
# --------------------------------------------------------------------------- #
def fsa_forward(x, consts):
    B, C, H, W = x.shape
    HW = H * W

    x_sa = x.reshape(B * C, HW)
    # torch.fft.fftshift(dim=None) also rolls batch & channel; ifftshift only undoes
    # the spatial part, so AGF output (b, c) reads input ((b - B//2) % B, (c - C//2) % C).
    x_agf = jnp.roll(x, (B // 2, C // 2), axis=(0, 1)).reshape(B * C, HW)
    # Per-destination-row filter: M_c repeats across the batch.
    mr = jnp.tile(consts["mr"], (B, 1))
    mi = jnp.tile(consts["mi"], (B, 1))

    kernel = functools.partial(fsa_kernel, B=B, C=C, HW=HW)
    out = pl.pallas_call(
        kernel,
        out_shape=jax.ShapeDtypeStruct((B * C, HW), jnp.float32),
    )(x_sa, x_agf, mr, mi, consts["dfc"], consts["eic"], consts["kcat"])
    return out.reshape(B, C, H, W)


# --------------------------------------------------------------------------- #
# Pure-JAX reference mirroring the PyTorch forward exactly (for verification).
# --------------------------------------------------------------------------- #
def fsa_reference(x, filt, wconv, ratio):
    B, C, H, W = x.shape
    crow, ccol = H // 2, W // 2
    mask_low = jnp.zeros((H, W), jnp.float32).at[
        crow - ratio:crow + ratio, ccol - ratio:ccol + ratio].set(1.0)
    mask_high = 1.0 - mask_low
    x_fre = jnp.fft.fftshift(jnp.fft.fft2(x, axes=(-2, -1), norm="ortho"))
    weight = filt[..., 0] + 1j * filt[..., 1]
    x_new = x_fre * mask_low * weight + x_fre * mask_high
    f_out = jnp.real(jnp.fft.ifft2(jnp.fft.ifftshift(x_new, axes=(-2, -1)),
                                   axes=(-2, -1)))
    avg = jnp.mean(x, axis=1, keepdims=True)
    mx = jnp.max(x, axis=1, keepdims=True)
    cat = jnp.concatenate([avg, mx], axis=1)
    conv = lax.conv_general_dilated(cat, wconv, (1, 1), ((3, 3), (3, 3)),
                                    dimension_numbers=("NCHW", "OIHW", "NCHW"),
                                    precision=lax.Precision.HIGHEST)
    sa_out = x * jax.nn.sigmoid(conv)
    return f_out.astype(jnp.float32) + sa_out


if __name__ == "__main__":
    # Shapes consistent with FSA(ratio, input_channel, size): ratio=3, C=4, size=16.
    B, C, H, W = 2, 4, 16, 16
    ratio = 3
    key = jax.random.PRNGKey(0)
    k1, k2, k3 = jax.random.split(key, 3)
    x = jax.random.normal(k1, (B, C, H, W), jnp.float32)
    filt = jax.random.normal(k2, (C, H, W, 2), jnp.float32)          # agf.filter
    wconv = 0.1 * jax.random.normal(k3, (1, 2, 7, 7), jnp.float32)   # sa.conv1.weight

    consts = build_fsa_constants(filt, wconv, ratio)                 # built ONCE
    fsa = jax.jit(fsa_forward)

    result = jax.block_until_ready(fsa(x, consts))

    ref = fsa_reference(x, filt, wconv, ratio)
    err = float(jnp.max(jnp.abs(result - ref)))
    # bf16 MXU operands with f32 accumulation -> bf16-level tolerance.
    assert jnp.allclose(result, ref, atol=2e-2, rtol=2e-2), f"max abs err {err}"
    print("KERNEL_OK")
</pallas_src>

<mosaic_0001>
module attributes {stable_mosaic.version = 11 : i64} {
  func.func @fsa_kernel(%arg0: memref<8x256xf32, #tpu.memory_space<vmem>>, %arg1: memref<8x256xf32, #tpu.memory_space<vmem>>, %arg2: memref<8x256xf32, #tpu.memory_space<vmem>>, %arg3: memref<8x256xf32, #tpu.memory_space<vmem>>, %arg4: memref<256x512xbf16, #tpu.memory_space<vmem>>, %arg5: memref<512x256xbf16, #tpu.memory_space<vmem>>, %arg6: memref<512x256xbf16, #tpu.memory_space<vmem>>, %arg7: memref<8x256xf32, #tpu.memory_space<vmem>>) attributes {dimension_semantics = [], scalar_prefetch = 0 : i64, scratch_operands = 0 : i64, tpu.core_type = #tpu.core_type<tc>} {
    %c0 = arith.constant 0 : index
    %c0_0 = arith.constant 0 : index
    %0 = vector.load %arg1[%c0, %c0_0] : memref<8x256xf32, #tpu.memory_space<vmem>>, vector<8x256xf32>
    %1 = arith.truncf %0 : vector<8x256xf32> to vector<8x256xbf16>
    %c0_1 = arith.constant 0 : index
    %c0_2 = arith.constant 0 : index
    %2 = vector.load %arg4[%c0_1, %c0_2] : memref<256x512xbf16, #tpu.memory_space<vmem>>, vector<256x512xbf16>
    %cst = arith.constant dense<0.000000e+00> : vector<8x512xf32>
    %3 = tpu.matmul %1, %2, %cst {dimension_numbers = #tpu.dot_dimension_numbers<[1], [0], [0], [1], [0, 0, 1, 1], [], []>} : vector<8x256xbf16>, vector<256x512xbf16>, vector<8x512xf32> -> vector<8x512xf32>
    %4 = vector.extract_strided_slice %3 {offsets = [0, 0], sizes = [8, 256], strides = [1, 1]} : vector<8x512xf32> to vector<8x256xf32>
    %5 = vector.extract_strided_slice %3 {offsets = [0, 256], sizes = [8, 256], strides = [1, 1]} : vector<8x512xf32> to vector<8x256xf32>
    %c0_3 = arith.constant 0 : index
    %c0_4 = arith.constant 0 : index
    %6 = vector.load %arg2[%c0_3, %c0_4] : memref<8x256xf32, #tpu.memory_space<vmem>>, vector<8x256xf32>
    %c0_5 = arith.constant 0 : index
    %c0_6 = arith.constant 0 : index
    %7 = vector.load %arg3[%c0_5, %c0_6] : memref<8x256xf32, #tpu.memory_space<vmem>>, vector<8x256xf32>
    %8 = arith.mulf %4, %6 : vector<8x256xf32>
    %9 = arith.mulf %5, %7 : vector<8x256xf32>
    %10 = arith.subf %8, %9 : vector<8x256xf32>
    %11 = arith.mulf %4, %7 : vector<8x256xf32>
    %12 = arith.mulf %5, %6 : vector<8x256xf32>
    %13 = arith.addf %11, %12 : vector<8x256xf32>
    %14 = tpu.concatenate %10, %13 in 1 : vector<8x256xf32>, vector<8x256xf32> -> vector<8x512xf32>
    %15 = arith.truncf %14 : vector<8x512xf32> to vector<8x512xbf16>
    %c0_7 = arith.constant 0 : index
    %c0_8 = arith.constant 0 : index
    %16 = vector.load %arg5[%c0_7, %c0_8] : memref<512x256xbf16, #tpu.memory_space<vmem>>, vector<512x256xbf16>
    %cst_9 = arith.constant dense<0.000000e+00> : vector<8x256xf32>
    %17 = tpu.matmul %15, %16, %cst_9 {dimension_numbers = #tpu.dot_dimension_numbers<[1], [0], [0], [1], [0, 0, 1, 1], [], []>} : vector<8x512xbf16>, vector<512x256xbf16>, vector<8x256xf32> -> vector<8x256xf32>
    %c0_10 = arith.constant 0 : index
    %c0_11 = arith.constant 0 : index
    %18 = vector.load %arg7[%c0_10, %c0_11] : memref<8x256xf32, #tpu.memory_space<vmem>>, vector<8x256xf32>
    tpu.vector_store %arg7[%c0_10, %c0_11], %17 {strides = array<i32>} : memref<8x256xf32, #tpu.memory_space<vmem>>, vector<8x256xf32>,
    %c0_12 = arith.constant 0 : index
    %c0_13 = arith.constant 0 : index
    %19 = vector.load %arg0[%c0_12, %c0_13] : memref<8x256xf32, #tpu.memory_space<vmem>>, vector<4x256xf32>
    %cst_14 = arith.constant dense<0.000000e+00> : vector<256xf32>
    %20 = vector.multi_reduction <add>, %19, %cst_14 [0] : vector<4x256xf32> to vector<256xf32>
    %21 = vector.shape_cast %20 : vector<256xf32> to vector<1x256xf32>
    %cst_15 = arith.constant 4.000000e+00 : f32
    %22 = vector.broadcast %cst_15 : f32 to vector<1x256xf32>
    %23 = arith.divf %21, %22 : vector<1x256xf32>
    %cst_16 = arith.constant dense<0xFF800000> : vector<256xf32>
    %24 = vector.multi_reduction <maximumf>, %19, %cst_16 [0] : vector<4x256xf32> to vector<256xf32>
    %25 = vector.shape_cast %24 : vector<256xf32> to vector<1x256xf32>
    %26 = tpu.concatenate %23, %25 in 1 : vector<1x256xf32>, vector<1x256xf32> -> vector<1x512xf32>
    %27 = arith.truncf %26 : vector<1x512xf32> to vector<1x512xbf16>
    %c0_17 = arith.constant 0 : index
    %c0_18 = arith.constant 0 : index
    %28 = vector.load %arg6[%c0_17, %c0_18] : memref<512x256xbf16, #tpu.memory_space<vmem>>, vector<512x256xbf16>
    %cst_19 = arith.constant dense<0.000000e+00> : vector<1x256xf32>
    %29 = tpu.matmul %27, %28, %cst_19 {dimension_numbers = #tpu.dot_dimension_numbers<[1], [0], [0], [1], [0, 0, 1, 1], [], []>} : vector<1x512xbf16>, vector<512x256xbf16>, vector<1x256xf32> -> vector<1x256xf32>
    %30 = arith.negf %29 : vector<1x256xf32>
    %31 = math.exp %30 : vector<1x256xf32>
    %cst_20 = arith.constant 1.000000e+00 : f32
    %32 = vector.broadcast %cst_20 : f32 to vector<1x256xf32>
    %33 = arith.addf %32, %31 : vector<1x256xf32>
    %34 = arith.divf %32, %33 : vector<1x256xf32>
    %c0_21 = arith.constant 0 : index
    %c0_22 = arith.constant 0 : index
    %35 = vector.load %arg7[%c0_21, %c0_22] : memref<8x256xf32, #tpu.memory_space<vmem>>, vector<4x256xf32>
    %36 = vector.broadcast %34 : vector<1x256xf32> to vector<4x256xf32>
    %37 = arith.mulf %19, %36 : vector<4x256xf32>
    %38 = arith.addf %35, %37 : vector<4x256xf32>
    %c0_23 = arith.constant 0 : index
    %c0_24 = arith.constant 0 : index
    %39 = vector.load %arg7[%c0_23, %c0_24] : memref<8x256xf32, #tpu.memory_space<vmem>>, vector<4x256xf32>
    tpu.vector_store %arg7[%c0_23, %c0_24], %38 {strides = array<i32>} : memref<8x256xf32, #tpu.memory_space<vmem>>, vector<4x256xf32>,
    %c4 = arith.constant 4 : index
    %c0_25 = arith.constant 0 : index
    %40 = vector.load %arg0[%c4, %c0_25] : memref<8x256xf32, #tpu.memory_space<vmem>>, vector<4x256xf32>
    %cst_26 = arith.constant dense<0.000000e+00> : vector<256xf32>
    %41 = vector.multi_reduction <add>, %40, %cst_26 [0] : vector<4x256xf32> to vector<256xf32>
    %42 = vector.shape_cast %41 : vector<256xf32> to vector<1x256xf32>
    %cst_27 = arith.constant 4.000000e+00 : f32
    %43 = vector.broadcast %cst_27 : f32 to vector<1x256xf32>
    %44 = arith.divf %42, %43 : vector<1x256xf32>
    %cst_28 = arith.constant dense<0xFF800000> : vector<256xf32>
    %45 = vector.multi_reduction <maximumf>, %40, %cst_28 [0] : vector<4x256xf32> to vector<256xf32>
    %46 = vector.shape_cast %45 : vector<256xf32> to vector<1x256xf32>
    %47 = tpu.concatenate %44, %46 in 1 : vector<1x256xf32>, vector<1x256xf32> -> vector<1x512xf32>
    %48 = arith.truncf %47 : vector<1x512xf32> to vector<1x512xbf16>
    %c0_29 = arith.constant 0 : index
    %c0_30 = arith.constant 0 : index
    %49 = vector.load %arg6[%c0_29, %c0_30] : memref<512x256xbf16, #tpu.memory_space<vmem>>, vector<512x256xbf16>
    %cst_31 = arith.constant dense<0.000000e+00> : vector<1x256xf32>
    %50 = tpu.matmul %48, %49, %cst_31 {dimension_numbers = #tpu.dot_dimension_numbers<[1], [0], [0], [1], [0, 0, 1, 1], [], []>} : vector<1x512xbf16>, vector<512x256xbf16>, vector<1x256xf32> -> vector<1x256xf32>
    %51 = arith.negf %50 : vector<1x256xf32>
    %52 = math.exp %51 : vector<1x256xf32>
    %cst_32 = arith.constant 1.000000e+00 : f32
    %53 = vector.broadcast %cst_32 : f32 to vector<1x256xf32>
    %54 = arith.addf %53, %52 : vector<1x256xf32>
    %55 = arith.divf %53, %54 : vector<1x256xf32>
    %c4_33 = arith.constant 4 : index
    %c0_34 = arith.constant 0 : index
    %56 = vector.load %arg7[%c4_33, %c0_34] : memref<8x256xf32, #tpu.memory_space<vmem>>, vector<4x256xf32>
    %57 = vector.broadcast %55 : vector<1x256xf32> to vector<4x256xf32>
    %58 = arith.mulf %40, %57 : vector<4x256xf32>
    %59 = arith.addf %56, %58 : vector<4x256xf32>
    %c4_35 = arith.constant 4 : index
    %c0_36 = arith.constant 0 : index
    %60 = vector.load %arg7[%c4_35, %c0_36] : memref<8x256xf32, #tpu.memory_space<vmem>>, vector<4x256xf32>
    tpu.vector_store %arg7[%c4_35, %c0_36], %59 {strides = array<i32>} : memref<8x256xf32, #tpu.memory_space<vmem>>, vector<4x256xf32>,
    return
  }
}

</mosaic_0001>

<llo_original>
// kernel: tile.14
$region0: #{tile.14}
  %s0 = inlined_call_operand.vmem [shape: f32[2,4,256], index: 0, kind: input, shape index: {}]
  %s1 = inlined_call_operand.vmem [shape: f32[8,256], index: 1, kind: output, shape index: {}]
  $region1: #{tile.14} parent=0
    #allocation0 [shape = 'u8[16384]{0}', space=vmem, size = 0x4000, scoped, tag = 'scoped mem for input reshape']
    %s3 = ssub.s32 16, 1
    %s4 = scalar_lea.vmem %s0, 12
    %v5 = vld [vmem:[%s4] sm:%s3]
    %s6 = scalar_lea.vmem [#allocation0], 24
    %7 = vst [vmem:[%s6] sm:%s3] %v5
    %s8 = scalar_lea.vmem %s0, 8
    %v9 = vld [vmem:[%s8] sm:%s3]
    %s10 = scalar_lea.vmem [#allocation0], 16
    %11 = vst [vmem:[%s10] sm:%s3] %v9
    %s12 = scalar_lea.vmem %s0, 4
    %v13 = vld [vmem:[%s12] sm:%s3]
    %s14 = scalar_lea.vmem [#allocation0], 8
    %15 = vst [vmem:[%s14] sm:%s3] %v13
    %v16 = vld [vmem:[%s0] sm:%s3]
    %17 = vst [vmem:[#allocation0] sm:%s3] %v16
    %v18 = vld [vmem:[#allocation0] sm:$0xf]
    %19 = vst [vmem:[%s1] sm:$0xf] %v18
    %s20 = scalar_lea.vmem [#allocation0], 8
    %v21 = vld [vmem:[%s20] sm:$0xf]
    %s22 = scalar_lea.vmem %s1, 8
    %23 = vst [vmem:[%s22] sm:$0xf] %v21
    %s24 = scalar_lea.vmem [#allocation0], 16
    %v25 = vld [vmem:[%s24] sm:$0xf]
    %s26 = scalar_lea.vmem %s1, 4
    %27 = vst [vmem:[%s26] sm:$0xf] %v25
    %s28 = scalar_lea.vmem [#allocation0], 24
    %v29 = vld [vmem:[%s28] sm:$0xf]
    %s30 = scalar_lea.vmem %s1, 12
    %31 = vst [vmem:[%s30] sm:$0xf] %v29

// kernel: fsa_forward.1
$region0: #{fsa_forward.1}
  #allocation0 [shape = 'u32[]', space=smem, size = 0x4, offset = 0x4, fixed_abs, tag = 'smem constant byte address 0x4 - core index']
  #allocation1 [shape = 'u32[72,128]{1,0:T(1,128)}', space=vmem, size = 0x9000, scoped, tag = 'internal scratch']
  %s0 = inlined_call_operand.vmem [shape: f32[8,256], index: 0, kind: input, shape index: {}]
  %s1 = inlined_call_operand.vmem [shape: f32[8,256], index: 1, kind: input, shape index: {}]
  %s2 = inlined_call_operand.vmem [shape: f32[8,256], index: 2, kind: input, shape index: {}]
  %s3 = inlined_call_operand.vmem [shape: f32[8,256], index: 3, kind: input, shape index: {}]
  %s4 = inlined_call_operand.vmem [shape: bf16[256,512], index: 4, kind: input, shape index: {}]
  %s5 = inlined_call_operand.hbm [shape: bf16[512,256], index: 5, kind: input, shape index: {}]
  %s6 = inlined_call_operand.hbm [shape: bf16[512,256], index: 6, kind: input, shape index: {}]
  %s7 = inlined_call_operand.vmem [shape: f32[8,256], index: 7, kind: output, shape index: {}]
  %s8 = sld [smem:[#allocation0]]
  $region46: #{fsa_forward.1} parent=0
    _
  %s10 = ssub.s32 1, %s8
  %s11 = scalar_select 0, %s10, %s8
  $region1: #{fsa_forward.1} parent=0
    #allocation2 [shape = 'u8[262144]{0}', space=vmem, size = 0x40000, scoped, tag = 'input window, operand 5, single buffered']
    #allocation3 [shape = 's32[1]{0}', space=sflag, size = 0x4, scoped, tag = 'scoped memory for fsa_forward.1']
    #allocation4 [shape = 'u8[262144]{0}', space=vmem, size = 0x40000, scoped, tag = 'input window, operand 6, single buffered']
    #allocation5 [shape = 's32[1]{0}', space=sflag, size = 0x4, scoped, tag = 'scoped memory for fsa_forward.1']
    %12 = vsyncpa [#allocation3], 0
    %13 = vsyncpa [#allocation5], 0
    // Predicated region
    $region2: #{fsa_forward.1} parent=1 // pred_check
      _
    $region3: #{fsa_forward.1} parent=1 // pred_check_branch
      %15 = sbr.rel (0) target = $region5
    $region4: #{fsa_forward.1} parent=1 // pred_region
      _
    $region5: #{fsa_forward.1} parent=1 // pred_fallthru
      _
    // Predicated region
    $region6: #{fsa_forward.1} parent=1 // pred_check
      _
    $region7: #{fsa_forward.1} parent=1 // pred_check_branch
      %17 = sbr.rel (0) target = $region9
    $region8: #{fsa_forward.1} parent=1 // pred_region
      _
    $region9: #{fsa_forward.1} parent=1 // pred_fallthru
      _
    // Predicated region
    $region10: #{fsa_forward.1} parent=1 // pred_check
      _
    $region11: #{fsa_forward.1} parent=1 // pred_check_branch
      %19 = sbr.rel (0) target = $region13
    $region12: #{fsa_forward.1} parent=1 // pred_region
      _
    $region13: #{fsa_forward.1} parent=1 // pred_fallthru
      _
    // Predicated region
    $region14: #{fsa_forward.1} parent=1 // pred_check
      _
    $region15: #{fsa_forward.1} parent=1 // pred_check_branch
      %21 = sbr.rel (0) target = $region17
    $region16: #{fsa_forward.1} parent=1 // pred_region
      _
    $region17: #{fsa_forward.1} parent=1 // pred_fallthru
      _
    // Predicated region
    $region18: #{fsa_forward.1} parent=1 // pred_check
      _
    $region19: #{fsa_forward.1} parent=1 // pred_check_branch
      %23 = sbr.rel (0) target = $region21
    $region20: #{fsa_forward.1} parent=1 // pred_region
      _
    $region21: #{fsa_forward.1} parent=1 // pred_fallthru
      _
    // Predicated region
    $region22: #{fsa_forward.1} parent=1 // pred_check
      _
    $region23: #{fsa_forward.1} parent=1 // pred_check_branch
      %25 = sbr.rel (0) target = $region25
    $region24: #{fsa_forward.1} parent=1 // pred_region
      %27 = vsyncadd [#allocation3], 0
      %s28 = sshll.u32 %s5, 4
      %s29 = int_to_ptr.hbm [resolvable:$true] %s28
      %s30 = sshll.u32 [#allocation2], 4
      %s31 = int_to_ptr.vmem [resolvable:$true] %s30
      %36 = dma.hbm_to_vmem [thread:$0]  %s29, 8192, %s31, [#allocation3], 128, 128, 8
    $region25: #{fsa_forward.1} parent=1 // pred_fallthru
      _
    // Predicated region
    $region26: #{fsa_forward.1} parent=1 // pred_check
      _
    $region27: #{fsa_forward.1} parent=1 // pred_check_branch
      %38 = sbr.rel (0) target = $region29
    $region28: #{fsa_forward.1} parent=1 // pred_region
      %40 = vsyncadd [#allocation5], 0
      %s41 = sshll.u32 %s6, 4
      %s42 = int_to_ptr.hbm [resolvable:$true] %s41
      %s43 = sshll.u32 [#allocation4], 4
      %s44 = int_to_ptr.vmem [resolvable:$true] %s43
      %49 = dma.hbm_to_vmem [thread:$0]  %s42, 8192, %s44, [#allocation5], 128, 128, 8
    $region29: #{fsa_forward.1} parent=1 // pred_fallthru
      _
    // Predicated region
    $region30: #{fsa_forward.1} parent=1 // pred_check
      _
    $region31: #{fsa_forward.1} parent=1 // pred_check_branch
      %51 = sbr.rel (0) target = $region33
    $region32: #{fsa_forward.1} parent=1 // pred_region
      %53 = dma.done [#allocation3], 8192
    $region33: #{fsa_forward.1} parent=1 // pred_fallthru
      _
    // Predicated region
    $region34: #{fsa_forward.1} parent=1 // pred_check
      _
    $region35: #{fsa_forward.1} parent=1 // pred_check_branch
      %55 = sbr.rel (0) target = $region37
    $region36: #{fsa_forward.1} parent=1 // pred_region
      %57 = dma.done [#allocation5], 8192
    $region37: #{fsa_forward.1} parent=1 // pred_fallthru
      _
    %v58 = vld [vmem:[%s1] sm:$0xff]
    %v59 = vld [vmem:[%s1 + $0x8] sm:$0xff]
    %v60 = vpack.c.bf16 %v58, %v58
    %v61 = vpack.c.bf16 %v59, %v59
    %v62 = vld [vmem:[%s4] sm:$0xff]
    %v63 = vld [vmem:[%s4 + $0x8] sm:$0xff]
    %v64 = vld [vmem:[%s4 + $0x10] sm:$0xff]
    %v65 = vld [vmem:[%s4 + $0x18] sm:$0xff]
    %v66 = vld [vmem:[%s4 + $0x20] sm:$0xff]
    %v67 = vld [vmem:[%s4 + $0x28] sm:$0xff]
    %v68 = vld [vmem:[%s4 + $0x30] sm:$0xff]
    %v69 = vld [vmem:[%s4 + $0x38] sm:$0xff]
    %v70 = vld [vmem:[%s4 + $0x40] sm:$0xff]
    %v71 = vld [vmem:[%s4 + $0x48] sm:$0xff]
    %v72 = vld [vmem:[%s4 + $0x50] sm:$0xff]
    %v73 = vld [vmem:[%s4 + $0x58] sm:$0xff]
    %v74 = vld [vmem:[%s4 + $0x60] sm:$0xff]
    %v75 = vld [vmem:[%s4 + $0x68] sm:$0xff]
    %v76 = vld [vmem:[%s4 + $0x70] sm:$0xff]
    %v77 = vld [vmem:[%s4 + $0x78] sm:$0xff]
    %v78 = vld [vmem:[%s4 + $0x80] sm:$0xff]
    %v79 = vld [vmem:[%s4 + $0x88] sm:$0xff]
    %v80 = vld [vmem:[%s4 + $0x90] sm:$0xff]
    %v81 = vld [vmem:[%s4 + $0x98] sm:$0xff]
    %v82 = vld [vmem:[%s4 + $0xa0] sm:$0xff]
    %v83 = vld [vmem:[%s4 + $0xa8] sm:$0xff]
    %v84 = vld [vmem:[%s4 + $0xb0] sm:$0xff]
    %v85 = vld [vmem:[%s4 + $0xb8] sm:$0xff]
    %v86 = vld [vmem:[%s4 + $0xc0] sm:$0xff]
    %v87 = vld [vmem:[%s4 + $0xc8] sm:$0xff]
    %v88 = vld [vmem:[%s4 + $0xd0] sm:$0xff]
    %v89 = vld [vmem:[%s4 + $0xd8] sm:$0xff]
    %v90 = vld [vmem:[%s4 + $0xe0] sm:$0xff]
    %v91 = vld [vmem:[%s4 + $0xe8] sm:$0xff]
    %v92 = vld [vmem:[%s4 + $0xf0] sm:$0xff]
    %v93 = vld [vmem:[%s4 + $0xf8] sm:$0xff]
    %v94 = vld [vmem:[%s4 + $0x100] sm:$0xff]
    %v95 = vld [vmem:[%s4 + $0x108] sm:$0xff]
    %v96 = vld [vmem:[%s4 + $0x110] sm:$0xff]
    %v97 = vld [vmem:[%s4 + $0x118] sm:$0xff]
    %v98 = vld [vmem:[%s4 + $0x120] sm:$0xff]
    %v99 = vld [vmem:[%s4 + $0x128] sm:$0xff]
    %v100 = vld [vmem:[%s4 + $0x130] sm:$0xff]
    %v101 = vld [vmem:[%s4 + $0x138] sm:$0xff]
    %v102 = vld [vmem:[%s4 + $0x140] sm:$0xff]
    %v103 = vld [vmem:[%s4 + $0x148] sm:$0xff]
    %v104 = vld [vmem:[%s4 + $0x150] sm:$0xff]
    %v105 = vld [vmem:[%s4 + $0x158] sm:$0xff]
    %v106 = vld [vmem:[%s4 + $0x160] sm:$0xff]
    %v107 = vld [vmem:[%s4 + $0x168] sm:$0xff]
    %v108 = vld [vmem:[%s4 + $0x170] sm:$0xff]
    %v109 = vld [vmem:[%s4 + $0x178] sm:$0xff]
    %v110 = vld [vmem:[%s4 + $0x180] sm:$0xff]
    %v111 = vld [vmem:[%s4 + $0x188] sm:$0xff]
    %v112 = vld [vmem:[%s4 + $0x190] sm:$0xff]
    %v113 = vld [vmem:[%s4 + $0x198] sm:$0xff]
    %v114 = vld [vmem:[%s4 + $0x1a0] sm:$0xff]
    %v115 = vld [vmem:[%s4 + $0x1a8] sm:$0xff]
    %v116 = vld [vmem:[%s4 + $0x1b0] sm:$0xff]
    %v117 = vld [vmem:[%s4 + $0x1b8] sm:$0xff]
    %v118 = vld [vmem:[%s4 + $0x1c0] sm:$0xff]
    %v119 = vld [vmem:[%s4 + $0x1c8] sm:$0xff]
    %v120 = vld [vmem:[%s4 + $0x1d0] sm:$0xff]
    %v121 = vld [vmem:[%s4 + $0x1d8] sm:$0xff]
    %v122 = vld [vmem:[%s4 + $0x1e0] sm:$0xff]
    %v123 = vld [vmem:[%s4 + $0x1e8] sm:$0xff]
    %v124 = vld [vmem:[%s4 + $0x1f0] sm:$0xff]
    %v125 = vld [vmem:[%s4 + $0x1f8] sm:$0xff]
    %v190 = vunpack.c.l.b16 %v62
    %v191 = vunpack.c.h.b16 %v62
    %v192 = vunpack.c.l.b16 %v63
    %v193 = vunpack.c.h.b16 %v63
    %v194 = vunpack.c.l.b16 %v64
    %v195 = vunpack.c.h.b16 %v64
    %v196 = vunpack.c.l.b16 %v65
    %v197 = vunpack.c.h.b16 %v65
    %v198 = vunpack.c.l.b16 %v66
    %v199 = vunpack.c.h.b16 %v66
    %v200 = vunpack.c.l.b16 %v67
    %v201 = vunpack.c.h.b16 %v67
    %v202 = vunpack.c.l.b16 %v68
    %v203 = vunpack.c.h.b16 %v68
    %v204 = vunpack.c.l.b16 %v69
    %v205 = vunpack.c.h.b16 %v69
    %v206 = vunpack.c.l.b16 %v70
    %v207 = vunpack.c.h.b16 %v70
    %v208 = vunpack.c.l.b16 %v71
    %v209 = vunpack.c.h.b16 %v71
    %v210 = vunpack.c.l.b16 %v72
    %v211 = vunpack.c.h.b16 %v72
    %v212 = vunpack.c.l.b16 %v73
    %v213 = vunpack.c.h.b16 %v73
    %v214 = vunpack.c.l.b16 %v74
    %v215 = vunpack.c.h.b16 %v74
    %v216 = vunpack.c.l.b16 %v75
    %v217 = vunpack.c.h.b16 %v75
    %v218 = vunpack.c.l.b16 %v76
    %v219 = vunpack.c.h.b16 %v76
    %v220 = vunpack.c.l.b16 %v77
    %v221 = vunpack.c.h.b16 %v77
    %v222 = vunpack.c.l.b16 %v78
    %v223 = vunpack.c.h.b16 %v78
    %v224 = vunpack.c.l.b16 %v79
    %v225 = vunpack.c.h.b16 %v79
    %v226 = vunpack.c.l.b16 %v80
    %v227 = vunpack.c.h.b16 %v80
    %v228 = vunpack.c.l.b16 %v81
    %v229 = vunpack.c.h.b16 %v81
    %v230 = vunpack.c.l.b16 %v82
    %v231 = vunpack.c.h.b16 %v82
    %v232 = vunpack.c.l.b16 %v83
    %v233 = vunpack.c.h.b16 %v83
    %v234 = vunpack.c.l.b16 %v84
    %v235 = vunpack.c.h.b16 %v84
    %v236 = vunpack.c.l.b16 %v85
    %v237 = vunpack.c.h.b16 %v85
    %v238 = vunpack.c.l.b16 %v86
    %v239 = vunpack.c.h.b16 %v86
    %v240 = vunpack.c.l.b16 %v87
    %v241 = vunpack.c.h.b16 %v87
    %v242 = vunpack.c.l.b16 %v88
    %v243 = vunpack.c.h.b16 %v88
    %v244 = vunpack.c.l.b16 %v89
    %v245 = vunpack.c.h.b16 %v89
    %v246 = vunpack.c.l.b16 %v90
    %v247 = vunpack.c.h.b16 %v90
    %v248 = vunpack.c.l.b16 %v91
    %v249 = vunpack.c.h.b16 %v91
    %v250 = vunpack.c.l.b16 %v92
    %v251 = vunpack.c.h.b16 %v92
    %v252 = vunpack.c.l.b16 %v93
    %v253 = vunpack.c.h.b16 %v93
    %v254 = vunpack.c.l.b16 %v94
    %v255 = vunpack.c.h.b16 %v94
    %v256 = vunpack.c.l.b16 %v95
    %v257 = vunpack.c.h.b16 %v95
    %v258 = vunpack.c.l.b16 %v96
    %v259 = vunpack.c.h.b16 %v96
    %v260 = vunpack.c.l.b16 %v97
    %v261 = vunpack.c.h.b16 %v97
    %v262 = vunpack.c.l.b16 %v98
    %v263 = vunpack.c.h.b16 %v98
    %v264 = vunpack.c.l.b16 %v99
    %v265 = vunpack.c.h.b16 %v99
    %v266 = vunpack.c.l.b16 %v100
    %v267 = vunpack.c.h.b16 %v100
    %v268 = vunpack.c.l.b16 %v101
    %v269 = vunpack.c.h.b16 %v101
    %v270 = vunpack.c.l.b16 %v102
    %v271 = vunpack.c.h.b16 %v102
    %v272 = vunpack.c.l.b16 %v103
    %v273 = vunpack.c.h.b16 %v103
    %v274 = vunpack.c.l.b16 %v104
    %v275 = vunpack.c.h.b16 %v104
    %v276 = vunpack.c.l.b16 %v105
    %v277 = vunpack.c.h.b16 %v105
    %v278 = vunpack.c.l.b16 %v106
    %v279 = vunpack.c.h.b16 %v106
    %v280 = vunpack.c.l.b16 %v107
    %v281 = vunpack.c.h.b16 %v107
    %v282 = vunpack.c.l.b16 %v108
    %v283 = vunpack.c.h.b16 %v108
    %v284 = vunpack.c.l.b16 %v109
    %v285 = vunpack.c.h.b16 %v109
    %v286 = vunpack.c.l.b16 %v110
    %v287 = vunpack.c.h.b16 %v110
    %v288 = vunpack.c.l.b16 %v111
    %v289 = vunpack.c.h.b16 %v111
    %v290 = vunpack.c.l.b16 %v112
    %v291 = vunpack.c.h.b16 %v112
    %v292 = vunpack.c.l.b16 %v113
    %v293 = vunpack.c.h.b16 %v113
    %v294 = vunpack.c.l.b16 %v114
    %v295 = vunpack.c.h.b16 %v114
    %v296 = vunpack.c.l.b16 %v115
    %v297 = vunpack.c.h.b16 %v115
    %v298 = vunpack.c.l.b16 %v116
    %v299 = vunpack.c.h.b16 %v116
    %v300 = vunpack.c.l.b16 %v117
    %v301 = vunpack.c.h.b16 %v117
    %v302 = vunpack.c.l.b16 %v118
    %v303 = vunpack.c.h.b16 %v118
    %v304 = vunpack.c.l.b16 %v119
    %v305 = vunpack.c.h.b16 %v119
    %v306 = vunpack.c.l.b16 %v120
    %v307 = vunpack.c.h.b16 %v120
    %v308 = vunpack.c.l.b16 %v121
    %v309 = vunpack.c.h.b16 %v121
    %v310 = vunpack.c.l.b16 %v122
    %v311 = vunpack.c.h.b16 %v122
    %v312 = vunpack.c.l.b16 %v123
    %v313 = vunpack.c.h.b16 %v123
    %v314 = vunpack.c.l.b16 %v124
    %v315 = vunpack.c.h.b16 %v124
    %v316 = vunpack.c.l.b16 %v125
    %v317 = vunpack.c.h.b16 %v125
    %v318 = vpack.c.b16 %v194, %v190
    %v319 = vpack.c.b16 %v195, %v191
    %v320 = vpack.c.b16 %v196, %v192
    %v321 = vpack.c.b16 %v197, %v193
    %v322 = vpack.c.b16 %v202, %v198
    %v323 = vpack.c.b16 %v203, %v199
    %v324 = vpack.c.b16 %v204, %v200
    %v325 = vpack.c.b16 %v205, %v201
    %v326 = vpack.c.b16 %v210, %v206
    %v327 = vpack.c.b16 %v211, %v207
    %v328 = vpack.c.b16 %v212, %v208
    %v329 = vpack.c.b16 %v213, %v209
    %v330 = vpack.c.b16 %v218, %v214
    %v331 = vpack.c.b16 %v219, %v215
    %v332 = vpack.c.b16 %v220, %v216
    %v333 = vpack.c.b16 %v221, %v217
    %v334 = vpack.c.b16 %v226, %v222
    %v335 = vpack.c.b16 %v227, %v223
    %v336 = vpack.c.b16 %v228, %v224
    %v337 = vpack.c.b16 %v229, %v225
    %v338 = vpack.c.b16 %v234, %v230
    %v339 = vpack.c.b16 %v235, %v231
    %v340 = vpack.c.b16 %v236, %v232
    %v341 = vpack.c.b16 %v237, %v233
    %v342 = vpack.c.b16 %v242, %v238
    %v343 = vpack.c.b16 %v243, %v239
    %v344 = vpack.c.b16 %v244, %v240
    %v345 = vpack.c.b16 %v245, %v241
    %v346 = vpack.c.b16 %v250, %v246
    %v347 = vpack.c.b16 %v251, %v247
    %v348 = vpack.c.b16 %v252, %v248
    %v349 = vpack.c.b16 %v253, %v249
    %v350 = vpack.c.b16 %v258, %v254
    %v351 = vpack.c.b16 %v259, %v255
    %v352 = vpack.c.b16 %v260, %v256
    %v353 = vpack.c.b16 %v261, %v257
    %v354 = vpack.c.b16 %v266, %v262
    %v355 = vpack.c.b16 %v267, %v263
    %v356 = vpack.c.b16 %v268, %v264
    %v357 = vpack.c.b16 %v269, %v265
    %v358 = vpack.c.b16 %v274, %v270
    %v359 = vpack.c.b16 %v275, %v271
    %v360 = vpack.c.b16 %v276, %v272
    %v361 = vpack.c.b16 %v277, %v273
    %v362 = vpack.c.b16 %v282, %v278
    %v363 = vpack.c.b16 %v283, %v279
    %v364 = vpack.c.b16 %v284, %v280
    %v365 = vpack.c.b16 %v285, %v281
    %v366 = vpack.c.b16 %v290, %v286
    %v367 = vpack.c.b16 %v291, %v287
    %v368 = vpack.c.b16 %v292, %v288
    %v369 = vpack.c.b16 %v293, %v289
    %v370 = vpack.c.b16 %v298, %v294
    %v371 = vpack.c.b16 %v299, %v295
    %v372 = vpack.c.b16 %v300, %v296
    %v373 = vpack.c.b16 %v301, %v297
    %v374 = vpack.c.b16 %v306, %v302
    %v375 = vpack.c.b16 %v307, %v303
    %v376 = vpack.c.b16 %v308, %v304
    %v377 = vpack.c.b16 %v309, %v305
    %v378 = vpack.c.b16 %v314, %v310
    %v379 = vpack.c.b16 %v315, %v311
    %v380 = vpack.c.b16 %v316, %v312
    %v381 = vpack.c.b16 %v317, %v313
    %446 = vmatpush.bf16.msra.mxu0 %v346
    %447 = vmatpush.bf16.msra.mxu0 %v342
    %448 = vmatpush.bf16.msra.mxu0 %v338
    %449 = vmatpush.bf16.msra.mxu0 %v334
    %450 = vmatpush.bf16.msra.mxu0 %v330
    %451 = vmatpush.bf16.msra.mxu0 %v326
    %452 = vmatpush.bf16.msra.mxu0 %v322
    %453 = vmatpush.bf16.msra.mxu0 %v318
    %454 = vmatmul.bf16.gmra.mxu0 %v60
    %v455 = vpop.f32.mrf.mxu0
    %v456 = vadd.f32 0.0, %v455
    %v457 = vpop.f32.mrf.mxu0
    %458 = vdwg.mxu0
    %459 = vmatpush.bf16.msra.mxu0 %v378
    %460 = vmatpush.bf16.msra.mxu0 %v374
    %461 = vmatpush.bf16.msra.mxu0 %v370
    %462 = vmatpush.bf16.msra.mxu0 %v366
    %463 = vmatpush.bf16.msra.mxu0 %v362
    %464 = vmatpush.bf16.msra.mxu0 %v358
    %465 = vmatpush.bf16.msra.mxu0 %v354
    %466 = vmatpush.bf16.msra.mxu0 %v350
    %467 = vmatmul.bf16.gmra.mxu0 %v61
    %v468 = vpop.f32.mrf.mxu0
    %v469 = vadd.f32 %v456, %v468
    %v470 = vpop.f32.mrf.mxu0
    %471 = vdwg.mxu0
    %472 = vmatpush.bf16.msra.mxu0 %v347
    %473 = vmatpush.bf16.msra.mxu0 %v343
    %474 = vmatpush.bf16.msra.mxu0 %v339
    %475 = vmatpush.bf16.msra.mxu0 %v335
    %476 = vmatpush.bf16.msra.mxu0 %v331
    %477 = vmatpush.bf16.msra.mxu0 %v327
    %478 = vmatpush.bf16.msra.mxu0 %v323
    %479 = vmatpush.bf16.msra.mxu0 %v319
    %480 = vmatmul.bf16.gmra.mxu0 %v60
    %v481 = vpop.f32.mrf.mxu0
    %v482 = vadd.f32 0.0, %v481
    %v483 = vpop.f32.mrf.mxu0
    %484 = vdwg.mxu0
    %485 = vmatpush.bf16.msra.mxu0 %v379
    %486 = vmatpush.bf16.msra.mxu0 %v375
    %487 = vmatpush.bf16.msra.mxu0 %v371
    %488 = vmatpush.bf16.msra.mxu0 %v367
    %489 = vmatpush.bf16.msra.mxu0 %v363
    %490 = vmatpush.bf16.msra.mxu0 %v359
    %491 = vmatpush.bf16.msra.mxu0 %v355
    %492 = vmatpush.bf16.msra.mxu0 %v351
    %493 = vmatmul.bf16.gmra.mxu0 %v61
    %v494 = vpop.f32.mrf.mxu0
    %v495 = vadd.f32 %v482, %v494
    %v496 = vpop.f32.mrf.mxu0
    %497 = vdwg.mxu0
    %498 = vmatpush.bf16.msra.mxu0 %v348
    %499 = vmatpush.bf16.msra.mxu0 %v344
    %500 = vmatpush.bf16.msra.mxu0 %v340
    %501 = vmatpush.bf16.msra.mxu0 %v336
    %502 = vmatpush.bf16.msra.mxu0 %v332
    %503 = vmatpush.bf16.msra.mxu0 %v328
    %504 = vmatpush.bf16.msra.mxu0 %v324
    %505 = vmatpush.bf16.msra.mxu0 %v320
    %506 = vmatmul.bf16.gmra.mxu0 %v60
    %v507 = vpop.f32.mrf.mxu0
    %v508 = vadd.f32 0.0, %v507
    %v509 = vpop.f32.mrf.mxu0
    %510 = vdwg.mxu0
    %511 = vmatpush.bf16.msra.mxu0 %v380
    %512 = vmatpush.bf16.msra.mxu0 %v376
    %513 = vmatpush.bf16.msra.mxu0 %v372
    %514 = vmatpush.bf16.msra.mxu0 %v368
    %515 = vmatpush.bf16.msra.mxu0 %v364
    %516 = vmatpush.bf16.msra.mxu0 %v360
    %517 = vmatpush.bf16.msra.mxu0 %v356
    %518 = vmatpush.bf16.msra.mxu0 %v352
    %519 = vmatmul.bf16.gmra.mxu0 %v61
    %v520 = vpop.f32.mrf.mxu0
    %v521 = vadd.f32 %v508, %v520
    %v522 = vpop.f32.mrf.mxu0
    %523 = vdwg.mxu0
    %524 = vmatpush.bf16.msra.mxu0 %v349
    %525 = vmatpush.bf16.msra.mxu0 %v345
    %526 = vmatpush.bf16.msra.mxu0 %v341
    %527 = vmatpush.bf16.msra.mxu0 %v337
    %528 = vmatpush.bf16.msra.mxu0 %v333
    %529 = vmatpush.bf16.msra.mxu0 %v329
    %530 = vmatpush.bf16.msra.mxu0 %v325
    %531 = vmatpush.bf16.msra.mxu0 %v321
    %532 = vmatmul.bf16.gmra.mxu0 %v60
    %v533 = vpop.f32.mrf.mxu0
    %v534 = vadd.f32 0.0, %v533
    %v535 = vpop.f32.mrf.mxu0
    %536 = vdwg.mxu0
    %537 = vmatpush.bf16.msra.mxu0 %v381
    %538 = vmatpush.bf16.msra.mxu0 %v377
    %539 = vmatpush.bf16.msra.mxu0 %v373
    %540 = vmatpush.bf16.msra.mxu0 %v369
    %541 = vmatpush.bf16.msra.mxu0 %v365
    %542 = vmatpush.bf16.msra.mxu0 %v361
    %543 = vmatpush.bf16.msra.mxu0 %v357
    %544 = vmatpush.bf16.msra.mxu0 %v353
    %545 = vmatmul.bf16.gmra.mxu0 %v61
    %v546 = vpop.f32.mrf.mxu0
    %v547 = vadd.f32 %v534, %v546
    %v548 = vpop.f32.mrf.mxu0
    %549 = vdwg.mxu0
    %v550 = vld [vmem:[%s2] sm:$0xff]
    %v551 = vld [vmem:[%s2 + $0x8] sm:$0xff]
    %v552 = vld [vmem:[%s3] sm:$0xff]
    %v553 = vld [vmem:[%s3 + $0x8] sm:$0xff]
    %v554 = vmul.f32 %v469, %v550
    %v555 = vmul.f32 %v495, %v551
    %v556 = vmul.f32 %v521, %v552
    %v557 = vmul.f32 %v547, %v553
    %v558 = vsub.f32 %v554, %v556
    %v559 = vsub.f32 %v555, %v557
    %v560 = vmul.f32 %v469, %v552
    %v561 = vmul.f32 %v495, %v553
    %v562 = vmul.f32 %v521, %v550
    %v563 = vmul.f32 %v547, %v551
    %v564 = vadd.f32 %v560, %v562
    %v565 = vadd.f32 %v561, %v563
    %v566 = vpack.c.bf16 %v558, %v558
    %v567 = vpack.c.bf16 %v559, %v559
    %v568 = vpack.c.bf16 %v564, %v564
    %v569 = vpack.c.bf16 %v565, %v565
    %v570 = vld [vmem:[#allocation2] sm:$0xff]
    %v571 = vld [vmem:[#allocation2 + $0x8] sm:$0xff]
    %v572 = vld [vmem:[#allocation2 + $0x10] sm:$0xff]
    %v573 = vld [vmem:[#allocation2 + $0x18] sm:$0xff]
    %v574 = vld [vmem:[#allocation2 + $0x20] sm:$0xff]
    %v575 = vld [vmem:[#allocation2 + $0x28] sm:$0xff]
    %v576 = vld [vmem:[#allocation2 + $0x30] sm:$0xff]
    %v577 = vld [vmem:[#allocation2 + $0x38] sm:$0xff]
    %v578 = vld [vmem:[#allocation2 + $0x40] sm:$0xff]
    %v579 = vld [vmem:[#allocation2 + $0x48] sm:$0xff]
    %v580 = vld [vmem:[#allocation2 + $0x50] sm:$0xff]
    %v581 = vld [vmem:[#allocation2 + $0x58] sm:$0xff]
    %v582 = vld [vmem:[#allocation2 + $0x60] sm:$0xff]
    %v583 = vld [vmem:[#allocation2 + $0x68] sm:$0xff]
    %v584 = vld [vmem:[#allocation2 + $0x70] sm:$0xff]
    %v585 = vld [vmem:[#allocation2 + $0x78] sm:$0xff]
    %v586 = vld [vmem:[#allocation2 + $0x80] sm:$0xff]
    %v587 = vld [vmem:[#allocation2 + $0x88] sm:$0xff]
    %v588 = vld [vmem:[#allocation2 + $0x90] sm:$0xff]
    %v589 = vld [vmem:[#allocation2 + $0x98] sm:$0xff]
    %v590 = vld [vmem:[#allocation2 + $0xa0] sm:$0xff]
    %v591 = vld [vmem:[#allocation2 + $0xa8] sm:$0xff]
    %v592 = vld [vmem:[#allocation2 + $0xb0] sm:$0xff]
    %v593 = vld [vmem:[#allocation2 + $0xb8] sm:$0xff]
    %v594 = vld [vmem:[#allocation2 + $0xc0] sm:$0xff]
    %v595 = vld [vmem:[#allocation2 + $0xc8] sm:$0xff]
    %v596 = vld [vmem:[#allocation2 + $0xd0] sm:$0xff]
    %v597 = vld [vmem:[#allocation2 + $0xd8] sm:$0xff]
    %v598 = vld [vmem:[#allocation2 + $0xe0] sm:$0xff]
    %v599 = vld [vmem:[#allocation2 + $0xe8] sm:$0xff]
    %v600 = vld [vmem:[#allocation2 + $0xf0] sm:$0xff]
    %v601 = vld [vmem:[#allocation2 + $0xf8] sm:$0xff]
    %v602 = vld [vmem:[#allocation2 + $0x100] sm:$0xff]
    %v603 = vld [vmem:[#allocation2 + $0x108] sm:$0xff]
    %v604 = vld [vmem:[#allocation2 + $0x110] sm:$0xff]
    %v605 = vld [vmem:[#allocation2 + $0x118] sm:$0xff]
    %v606 = vld [vmem:[#allocation2 + $0x120] sm:$0xff]
    %v607 = vld [vmem:[#allocation2 + $0x128] sm:$0xff]
    %v608 = vld [vmem:[#allocation2 + $0x130] sm:$0xff]
    %v609 = vld [vmem:[#allocation2 + $0x138] sm:$0xff]
    %v610 = vld [vmem:[#allocation2 + $0x140] sm:$0xff]
    %v611 = vld [vmem:[#allocation2 + $0x148] sm:$0xff]
    %v612 = vld [vmem:[#allocation2 + $0x150] sm:$0xff]
    %v613 = vld [vmem:[#allocation2 + $0x158] sm:$0xff]
    %v614 = vld [vmem:[#allocation2 + $0x160] sm:$0xff]
    %v615 = vld [vmem:[#allocation2 + $0x168] sm:$0xff]
    %v616 = vld [vmem:[#allocation2 + $0x170] sm:$0xff]
    %v617 = vld [vmem:[#allocation2 + $0x178] sm:$0xff]
    %v618 = vld [vmem:[#allocation2 + $0x180] sm:$0xff]
    %v619 = vld [vmem:[#allocation2 + $0x188] sm:$0xff]
    %v620 = vld [vmem:[#allocation2 + $0x190] sm:$0xff]
    %v621 = vld [vmem:[#allocation2 + $0x198] sm:$0xff]
    %v622 = vld [vmem:[#allocation2 + $0x1a0] sm:$0xff]
    %v623 = vld [vmem:[#allocation2 + $0x1a8] sm:$0xff]
    %v624 = vld [vmem:[#allocation2 + $0x1b0] sm:$0xff]
    %v625 = vld [vmem:[#allocation2 + $0x1b8] sm:$0xff]
    %v626 = vld [vmem:[#allocation2 + $0x1c0] sm:$0xff]
    %v627 = vld [vmem:[#allocation2 + $0x1c8] sm:$0xff]
    %v628 = vld [vmem:[#allocation2 + $0x1d0] sm:$0xff]
    %v629 = vld [vmem:[#allocation2 + $0x1d8] sm:$0xff]
    %v630 = vld [vmem:[#allocation2 + $0x1e0] sm:$0xff]
    %v631 = vld [vmem:[#allocation2 + $0x1e8] sm:$0xff]
    %v632 = vld [vmem:[#allocation2 + $0x1f0] sm:$0xff]
    %v633 = vld [vmem:[#allocation2 + $0x1f8] sm:$0xff]
    %v698 = vunpack.c.l.b16 %v570
    %v699 = vunpack.c.h.b16 %v570
    %v700 = vunpack.c.l.b16 %v571
    %v701 = vunpack.c.h.b16 %v571
    %v702 = vunpack.c.l.b16 %v572
    %v703 = vunpack.c.h.b16 %v572
    %v704 = vunpack.c.l.b16 %v573
    %v705 = vunpack.c.h.b16 %v573
    %v706 = vunpack.c.l.b16 %v574
    %v707 = vunpack.c.h.b16 %v574
    %v708 = vunpack.c.l.b16 %v575
    %v709 = vunpack.c.h.b16 %v575
    %v710 = vunpack.c.l.b16 %v576
    %v711 = vunpack.c.h.b16 %v576
    %v712 = vunpack.c.l.b16 %v577
    %v713 = vunpack.c.h.b16 %v577
    %v714 = vunpack.c.l.b16 %v578
    %v715 = vunpack.c.h.b16 %v578
    %v716 = vunpack.c.l.b16 %v579
    %v717 = vunpack.c.h.b16 %v579
    %v718 = vunpack.c.l.b16 %v580
    %v719 = vunpack.c.h.b16 %v580
    %v720 = vunpack.c.l.b16 %v581
    %v721 = vunpack.c.h.b16 %v581
    %v722 = vunpack.c.l.b16 %v582
    %v723 = vunpack.c.h.b16 %v582
    %v724 = vunpack.c.l.b16 %v583
    %v725 = vunpack.c.h.b16 %v583
    %v726 = vunpack.c.l.b16 %v584
    %v727 = vunpack.c.h.b16 %v584
    %v728 = vunpack.c.l.b16 %v585
    %v729 = vunpack.c.h.b16 %v585
    %v730 = vunpack.c.l.b16 %v586
    %v731 = vunpack.c.h.b16 %v586
    %v732 = vunpack.c.l.b16 %v587
    %v733 = vunpack.c.h.b16 %v587
    %v734 = vunpack.c.l.b16 %v588
    %v735 = vunpack.c.h.b16 %v588
    %v736 = vunpack.c.l.b16 %v589
    %v737 = vunpack.c.h.b16 %v589
    %v738 = vunpack.c.l.b16 %v590
    %v739 = vunpack.c.h.b16 %v590
    %v740 = vunpack.c.l.b16 %v591
    %v741 = vunpack.c.h.b16 %v591
    %v742 = vunpack.c.l.b16 %v592
    %v743 = vunpack.c.h.b16 %v592
    %v744 = vunpack.c.l.b16 %v593
    %v745 = vunpack.c.h.b16 %v593
    %v746 = vunpack.c.l.b16 %v594
    %v747 = vunpack.c.h.b16 %v594
    %v748 = vunpack.c.l.b16 %v595
    %v749 = vunpack.c.h.b16 %v595
    %v750 = vunpack.c.l.b16 %v596
    %v751 = vunpack.c.h.b16 %v596
    %v752 = vunpack.c.l.b16 %v597
    %v753 = vunpack.c.h.b16 %v597
    %v754 = vunpack.c.l.b16 %v598
    %v755 = vunpack.c.h.b16 %v598
    %v756 = vunpack.c.l.b16 %v599
    %v757 = vunpack.c.h.b16 %v599
    %v758 = vunpack.c.l.b16 %v600
    %v759 = vunpack.c.h.b16 %v600
    %v760 = vunpack.c.l.b16 %v601
    %v761 = vunpack.c.h.b16 %v601
    %v762 = vunpack.c.l.b16 %v602
    %v763 = vunpack.c.h.b16 %v602
    %v764 = vunpack.c.l.b16 %v603
    %v765 = vunpack.c.h.b16 %v603
    %v766 = vunpack.c.l.b16 %v604
    %v767 = vunpack.c.h.b16 %v604
    %v768 = vunpack.c.l.b16 %v605
    %v769 = vunpack.c.h.b16 %v605
    %v770 = vunpack.c.l.b16 %v606
    %v771 = vunpack.c.h.b16 %v606
    %v772 = vunpack.c.l.b16 %v607
    %v773 = vunpack.c.h.b16 %v607
    %v774 = vunpack.c.l.b16 %v608
    %v775 = vunpack.c.h.b16 %v608
    %v776 = vunpack.c.l.b16 %v609
    %v777 = vunpack.c.h.b16 %v609
    %v778 = vunpack.c.l.b16 %v610
    %v779 = vunpack.c.h.b16 %v610
    %v780 = vunpack.c.l.b16 %v611
    %v781 = vunpack.c.h.b16 %v611
    %v782 = vunpack.c.l.b16 %v612
    %v783 = vunpack.c.h.b16 %v612
    %v784 = vunpack.c.l.b16 %v613
    %v785 = vunpack.c.h.b16 %v613
    %v786 = vunpack.c.l.b16 %v614
    %v787 = vunpack.c.h.b16 %v614
    %v788 = vunpack.c.l.b16 %v615
    %v789 = vunpack.c.h.b16 %v615
    %v790 = vunpack.c.l.b16 %v616
    %v791 = vunpack.c.h.b16 %v616
    %v792 = vunpack.c.l.b16 %v617
    %v793 = vunpack.c.h.b16 %v617
    %v794 = vunpack.c.l.b16 %v618
    %v795 = vunpack.c.h.b16 %v618
    %v796 = vunpack.c.l.b16 %v619
    %v797 = vunpack.c.h.b16 %v619
    %v798 = vunpack.c.l.b16 %v620
    %v799 = vunpack.c.h.b16 %v620
    %v800 = vunpack.c.l.b16 %v621
    %v801 = vunpack.c.h.b16 %v621
    %v802 = vunpack.c.l.b16 %v622
    %v803 = vunpack.c.h.b16 %v622
    %v804 = vunpack.c.l.b16 %v623
    %v805 = vunpack.c.h.b16 %v623
    %v806 = vunpack.c.l.b16 %v624
    %v807 = vunpack.c.h.b16 %v624
    %v808 = vunpack.c.l.b16 %v625
    %v809 = vunpack.c.h.b16 %v625
    %v810 = vunpack.c.l.b16 %v626
    %v811 = vunpack.c.h.b16 %v626
    %v812 = vunpack.c.l.b16 %v627
    %v813 = vunpack.c.h.b16 %v627
    %v814 = vunpack.c.l.b16 %v628
    %v815 = vunpack.c.h.b16 %v628
    %v816 = vunpack.c.l.b16 %v629
    %v817 = vunpack.c.h.b16 %v629
    %v818 = vunpack.c.l.b16 %v630
    %v819 = vunpack.c.h.b16 %v630
    %v820 = vunpack.c.l.b16 %v631
    %v821 = vunpack.c.h.b16 %v631
    %v822 = vunpack.c.l.b16 %v632
    %v823 = vunpack.c.h.b16 %v632
    %v824 = vunpack.c.l.b16 %v633
    %v825 = vunpack.c.h.b16 %v633
    %v826 = vpack.c.b16 %v700, %v698
    %v827 = vpack.c.b16 %v701, %v699
    %v828 = vpack.c.b16 %v704, %v702
    %v829 = vpack.c.b16 %v705, %v703
    %v830 = vpack.c.b16 %v708, %v706
    %v831 = vpack.c.b16 %v709, %v707
    %v832 = vpack.c.b16 %v712, %v710
    %v833 = vpack.c.b16 %v713, %v711
    %v834 = vpack.c.b16 %v716, %v714
    %v835 = vpack.c.b16 %v717, %v715
    %v836 = vpack.c.b16 %v720, %v718
    %v837 = vpack.c.b16 %v721, %v719
    %v838 = vpack.c.b16 %v724, %v722
    %v839 = vpack.c.b16 %v725, %v723
    %v840 = vpack.c.b16 %v728, %v726
    %v841 = vpack.c.b16 %v729, %v727
    %v842 = vpack.c.b16 %v732, %v730
    %v843 = vpack.c.b16 %v733, %v731
    %v844 = vpack.c.b16 %v736, %v734
    %v845 = vpack.c.b16 %v737, %v735
    %v846 = vpack.c.b16 %v740, %v738
    %v847 = vpack.c.b16 %v741, %v739
    %v848 = vpack.c.b16 %v744, %v742
    %v849 = vpack.c.b16 %v745, %v743
    %v850 = vpack.c.b16 %v748, %v746
    %v851 = vpack.c.b16 %v749, %v747
    %v852 = vpack.c.b16 %v752, %v750
    %v853 = vpack.c.b16 %v753, %v751
    %v854 = vpack.c.b16 %v756, %v754
    %v855 = vpack.c.b16 %v757, %v755
    %v856 = vpack.c.b16 %v760, %v758
    %v857 = vpack.c.b16 %v761, %v759
    %v858 = vpack.c.b16 %v764, %v762
    %v859 = vpack.c.b16 %v765, %v763
    %v860 = vpack.c.b16 %v768, %v766
    %v861 = vpack.c.b16 %v769, %v767
    %v862 = vpack.c.b16 %v772, %v770
    %v863 = vpack.c.b16 %v773, %v771
    %v864 = vpack.c.b16 %v776, %v774
    %v865 = vpack.c.b16 %v777, %v775
    %v866 = vpack.c.b16 %v780, %v778
    %v867 = vpack.c.b16 %v781, %v779
    %v868 = vpack.c.b16 %v784, %v782
    %v869 = vpack.c.b16 %v785, %v783
    %v870 = vpack.c.b16 %v788, %v786
    %v871 = vpack.c.b16 %v789, %v787
    %v872 = vpack.c.b16 %v792, %v790
    %v873 = vpack.c.b16 %v793, %v791
    %v874 = vpack.c.b16 %v796, %v794
    %v875 = vpack.c.b16 %v797, %v795
    %v876 = vpack.c.b16 %v800, %v798
    %v877 = vpack.c.b16 %v801, %v799
    %v878 = vpack.c.b16 %v804, %v802
    %v879 = vpack.c.b16 %v805, %v803
    %v880 = vpack.c.b16 %v808, %v806
    %v881 = vpack.c.b16 %v809, %v807
    %v882 = vpack.c.b16 %v812, %v810
    %v883 = vpack.c.b16 %v813, %v811
    %v884 = vpack.c.b16 %v816, %v814
    %v885 = vpack.c.b16 %v817, %v815
    %v886 = vpack.c.b16 %v820, %v818
    %v887 = vpack.c.b16 %v821, %v819
    %v888 = vpack.c.b16 %v824, %v822
    %v889 = vpack.c.b16 %v825, %v823
    %954 = vmatpush.bf16.msra.mxu0 %v840
    %955 = vmatpush.bf16.msra.mxu0 %v838
    %956 = vmatpush.bf16.msra.mxu0 %v836
    %957 = vmatpush.bf16.msra.mxu0 %v834
    %958 = vmatpush.bf16.msra.mxu0 %v832
    %959 = vmatpush.bf16.msra.mxu0 %v830
    %960 = vmatpush.bf16.msra.mxu0 %v828
    %961 = vmatpush.bf16.msra.mxu0 %v826
    %962 = vmatmul.bf16.gmra.mxu0 %v566
    %v963 = vpop.f32.mrf.mxu0
    %v964 = vadd.f32 0.0, %v963
    %v965 = vpop.f32.mrf.mxu0
    %966 = vdwg.mxu0
    %967 = vmatpush.bf16.msra.mxu0 %v856
    %968 = vmatpush.bf16.msra.mxu0 %v854
    %969 = vmatpush.bf16.msra.mxu0 %v852
    %970 = vmatpush.bf16.msra.mxu0 %v850
    %971 = vmatpush.bf16.msra.mxu0 %v848
    %972 = vmatpush.bf16.msra.mxu0 %v846
    %973 = vmatpush.bf16.msra.mxu0 %v844
    %974 = vmatpush.bf16.msra.mxu0 %v842
    %975 = vmatmul.bf16.gmra.mxu0 %v567
    %v976 = vpop.f32.mrf.mxu0
    %v977 = vadd.f32 %v964, %v976
    %v978 = vpop.f32.mrf.mxu0
    %979 = vdwg.mxu0
    %980 = vmatpush.bf16.msra.mxu0 %v872
    %981 = vmatpush.bf16.msra.mxu0 %v870
    %982 = vmatpush.bf16.msra.mxu0 %v868
    %983 = vmatpush.bf16.msra.mxu0 %v866
    %984 = vmatpush.bf16.msra.mxu0 %v864
    %985 = vmatpush.bf16.msra.mxu0 %v862
    %986 = vmatpush.bf16.msra.mxu0 %v860
    %987 = vmatpush.bf16.msra.mxu0 %v858
    %988 = vmatmul.bf16.gmra.mxu0 %v568
    %v989 = vpop.f32.mrf.mxu0
    %v990 = vadd.f32 %v977, %v989
    %v991 = vpop.f32.mrf.mxu0
    %992 = vdwg.mxu0
    %993 = vmatpush.bf16.msra.mxu0 %v888
    %994 = vmatpush.bf16.msra.mxu0 %v886
    %995 = vmatpush.bf16.msra.mxu0 %v884
    %996 = vmatpush.bf16.msra.mxu0 %v882
    %997 = vmatpush.bf16.msra.mxu0 %v880
    %998 = vmatpush.bf16.msra.mxu0 %v878
    %999 = vmatpush.bf16.msra.mxu0 %v876
    %1000 = vmatpush.bf16.msra.mxu0 %v874
    %1001 = vmatmul.bf16.gmra.mxu0 %v569
    %v1002 = vpop.f32.mrf.mxu0
    %v1003 = vadd.f32 %v990, %v1002
    %v1004 = vpop.f32.mrf.mxu0
    %1005 = vdwg.mxu0
    %1006 = vmatpush.bf16.msra.mxu0 %v841
    %1007 = vmatpush.bf16.msra.mxu0 %v839
    %1008 = vmatpush.bf16.msra.mxu0 %v837
    %1009 = vmatpush.bf16.msra.mxu0 %v835
    %1010 = vmatpush.bf16.msra.mxu0 %v833
    %1011 = vmatpush.bf16.msra.mxu0 %v831
    %1012 = vmatpush.bf16.msra.mxu0 %v829
    %1013 = vmatpush.bf16.msra.mxu0 %v827
    %1014 = vmatmul.bf16.gmra.mxu0 %v566
    %v1015 = vpop.f32.mrf.mxu0
    %v1016 = vadd.f32 0.0, %v1015
    %v1017 = vpop.f32.mrf.mxu0
    %1018 = vdwg.mxu0
    %1019 = vmatpush.bf16.msra.mxu0 %v857
    %1020 = vmatpush.bf16.msra.mxu0 %v855
    %1021 = vmatpush.bf16.msra.mxu0 %v853
    %1022 = vmatpush.bf16.msra.mxu0 %v851
    %1023 = vmatpush.bf16.msra.mxu0 %v849
    %1024 = vmatpush.bf16.msra.mxu0 %v847
    %1025 = vmatpush.bf16.msra.mxu0 %v845
    %1026 = vmatpush.bf16.msra.mxu0 %v843
    %1027 = vmatmul.bf16.gmra.mxu0 %v567
    %v1028 = vpop.f32.mrf.mxu0
    %v1029 = vadd.f32 %v1016, %v1028
    %v1030 = vpop.f32.mrf.mxu0
    %1031 = vdwg.mxu0
    %1032 = vmatpush.bf16.msra.mxu0 %v873
    %1033 = vmatpush.bf16.msra.mxu0 %v871
    %1034 = vmatpush.bf16.msra.mxu0 %v869
    %1035 = vmatpush.bf16.msra.mxu0 %v867
    %1036 = vmatpush.bf16.msra.mxu0 %v865
    %1037 = vmatpush.bf16.msra.mxu0 %v863
    %1038 = vmatpush.bf16.msra.mxu0 %v861
    %1039 = vmatpush.bf16.msra.mxu0 %v859
    %1040 = vmatmul.bf16.gmra.mxu0 %v568
    %v1041 = vpop.f32.mrf.mxu0
    %v1042 = vadd.f32 %v1029, %v1041
    %v1043 = vpop.f32.mrf.mxu0
    %1044 = vdwg.mxu0
    %1045 = vmatpush.bf16.msra.mxu0 %v889
    %1046 = vmatpush.bf16.msra.mxu0 %v887
    %1047 = vmatpush.bf16.msra.mxu0 %v885
    %1048 = vmatpush.bf16.msra.mxu0 %v883
    %1049 = vmatpush.bf16.msra.mxu0 %v881
    %1050 = vmatpush.bf16.msra.mxu0 %v879
    %1051 = vmatpush.bf16.msra.mxu0 %v877
    %1052 = vmatpush.bf16.msra.mxu0 %v875
    %1053 = vmatmul.bf16.gmra.mxu0 %v569
    %v1054 = vpop.f32.mrf.mxu0
    %v1055 = vadd.f32 %v1042, %v1054
    %v1056 = vpop.f32.mrf.mxu0
    %1057 = vdwg.mxu0
    %1058 = vst [vmem:[%s7] sm:$0xff] %v1003
    %1059 = vst [vmem:[%s7 + $0x8] sm:$0xff] %v1055
    %v1060 = vld [vmem:[%s0] sm:$0xf]
    %v1061 = vld [vmem:[%s0 + $0x8] sm:$0xf]
    %vm1062 = vcmask 1043456
    %v1063 = vsel %vm1062, %v1060, 0.0
    %v1064 = vrot.slane %v1063, 4
    %v1065 = vadd.f32 %v1063, %v1064
    %v1066 = vrot.slane %v1065, 2
    %v1067 = vadd.f32 %v1065, %v1066
    %v1068 = vrot.slane %v1067, 1
    %v1069 = vadd.f32 %v1067, %v1068
    %v1070 = vsel %vm1062, %v1061, 0.0
    %v1071 = vrot.slane %v1070, 4
    %v1072 = vadd.f32 %v1070, %v1071
    %v1073 = vrot.slane %v1072, 2
    %v1074 = vadd.f32 %v1072, %v1073
    %v1075 = vrot.slane %v1074, 1
    %v1076 = vadd.f32 %v1074, %v1075
    %v1077 = vrcp.pop 4.0
    %v1078 = vmul.f32 4.0, %v1077
    %v1079 = vsub.f32 1.0, %v1078
    %v1080 = vmul.f32 %v1077, %v1079
    %v1081 = vadd.f32 %v1077, %v1080
    %vm1082 = vweird.f32 %v1077
    %v1083 = vsel %vm1082, %v1077, %v1081
    %v1084 = vmul.f32 %v1069, %v1083
    %v1085 = vmul.f32 %v1076, %v1083
    %v1086 = vsel %vm1062, %v1060, -inf
    %v1087 = vrot.slane %v1086, 4
    %v1088 = vmax.f32 %v1086, %v1087
    %v1089 = vrot.slane %v1088, 2
    %v1090 = vmax.f32 %v1088, %v1089
    %v1091 = vrot.slane %v1090, 1
    %v1092 = vmax.f32 %v1090, %v1091
    %v1093 = vsel %vm1062, %v1061, -inf
    %v1094 = vrot.slane %v1093, 4
    %v1095 = vmax.f32 %v1093, %v1094
    %v1096 = vrot.slane %v1095, 2
    %v1097 = vmax.f32 %v1095, %v1096
    %v1098 = vrot.slane %v1097, 1
    %v1099 = vmax.f32 %v1097, %v1098
    %v1100 = vpack.c.bf16 %v1084, %v1084
    %v1101 = vpack.c.bf16 %v1085, %v1085
    %v1102 = vpack.c.bf16 %v1092, %v1092
    %v1103 = vpack.c.bf16 %v1099, %v1099
    %v1104 = vld [vmem:[#allocation4] sm:$0xff]
    %v1105 = vld [vmem:[#allocation4 + $0x8] sm:$0xff]
    %v1106 = vld [vmem:[#allocation4 + $0x10] sm:$0xff]
    %v1107 = vld [vmem:[#allocation4 + $0x18] sm:$0xff]
    %v1108 = vld [vmem:[#allocation4 + $0x20] sm:$0xff]
    %v1109 = vld [vmem:[#allocation4 + $0x28] sm:$0xff]
    %v1110 = vld [vmem:[#allocation4 + $0x30] sm:$0xff]
    %v1111 = vld [vmem:[#allocation4 + $0x38] sm:$0xff]
    %v1112 = vld [vmem:[#allocation4 + $0x40] sm:$0xff]
    %v1113 = vld [vmem:[#allocation4 + $0x48] sm:$0xff]
    %v1114 = vld [vmem:[#allocation4 + $0x50] sm:$0xff]
    %v1115 = vld [vmem:[#allocation4 + $0x58] sm:$0xff]
    %v1116 = vld [vmem:[#allocation4 + $0x60] sm:$0xff]
    %v1117 = vld [vmem:[#allocation4 + $0x68] sm:$0xff]
    %v1118 = vld [vmem:[#allocation4 + $0x70] sm:$0xff]
    %v1119 = vld [vmem:[#allocation4 + $0x78] sm:$0xff]
    %v1120 = vld [vmem:[#allocation4 + $0x80] sm:$0xff]
    %v1121 = vld [vmem:[#allocation4 + $0x88] sm:$0xff]
    %v1122 = vld [vmem:[#allocation4 + $0x90] sm:$0xff]
    %v1123 = vld [vmem:[#allocation4 + $0x98] sm:$0xff]
    %v1124 = vld [vmem:[#allocation4 + $0xa0] sm:$0xff]
    %v1125 = vld [vmem:[#allocation4 + $0xa8] sm:$0xff]
    %v1126 = vld [vmem:[#allocation4 + $0xb0] sm:$0xff]
    %v1127 = vld [vmem:[#allocation4 + $0xb8] sm:$0xff]
    %v1128 = vld [vmem:[#allocation4 + $0xc0] sm:$0xff]
    %v1129 = vld [vmem:[#allocation4 + $0xc8] sm:$0xff]
    %v1130 = vld [vmem:[#allocation4 + $0xd0] sm:$0xff]
    %v1131 = vld [vmem:[#allocation4 + $0xd8] sm:$0xff]
    %v1132 = vld [vmem:[#allocation4 + $0xe0] sm:$0xff]
    %v1133 = vld [vmem:[#allocation4 + $0xe8] sm:$0xff]
    %v1134 = vld [vmem:[#allocation4 + $0xf0] sm:$0xff]
    %v1135 = vld [vmem:[#allocation4 + $0xf8] sm:$0xff]
    %v1136 = vld [vmem:[#allocation4 + $0x100] sm:$0xff]
    %v1137 = vld [vmem:[#allocation4 + $0x108] sm:$0xff]
    %v1138 = vld [vmem:[#allocation4 + $0x110] sm:$0xff]
    %v1139 = vld [vmem:[#allocation4 + $0x118] sm:$0xff]
    %v1140 = vld [vmem:[#allocation4 + $0x120] sm:$0xff]
    %v1141 = vld [vmem:[#allocation4 + $0x128] sm:$0xff]
    %v1142 = vld [vmem:[#allocation4 + $0x130] sm:$0xff]
    %v1143 = vld [vmem:[#allocation4 + $0x138] sm:$0xff]
    %v1144 = vld [vmem:[#allocation4 + $0x140] sm:$0xff]
    %v1145 = vld [vmem:[#allocation4 + $0x148] sm:$0xff]
    %v1146 = vld [vmem:[#allocation4 + $0x150] sm:$0xff]
    %v1147 = vld [vmem:[#allocation4 + $0x158] sm:$0xff]
    %v1148 = vld [vmem:[#allocation4 + $0x160] sm:$0xff]
    %v1149 = vld [vmem:[#allocation4 + $0x168] sm:$0xff]
    %v1150 = vld [vmem:[#allocation4 + $0x170] sm:$0xff]
    %v1151 = vld [vmem:[#allocation4 + $0x178] sm:$0xff]
    %v1152 = vld [vmem:[#allocation4 + $0x180] sm:$0xff]
    %v1153 = vld [vmem:[#allocation4 + $0x188] sm:$0xff]
    %v1154 = vld [vmem:[#allocation4 + $0x190] sm:$0xff]
    %v1155 = vld [vmem:[#allocation4 + $0x198] sm:$0xff]
    %v1156 = vld [vmem:[#allocation4 + $0x1a0] sm:$0xff]
    %v1157 = vld [vmem:[#allocation4 + $0x1a8] sm:$0xff]
    %v1158 = vld [vmem:[#allocation4 + $0x1b0] sm:$0xff]
    %v1159 = vld [vmem:[#allocation4 + $0x1b8] sm:$0xff]
    %v1160 = vld [vmem:[#allocation4 + $0x1c0] sm:$0xff]
    %v1161 = vld [vmem:[#allocation4 + $0x1c8] sm:$0xff]
    %v1162 = vld [vmem:[#allocation4 + $0x1d0] sm:$0xff]
    %v1163 = vld [vmem:[#allocation4 + $0x1d8] sm:$0xff]
    %v1164 = vld [vmem:[#allocation4 + $0x1e0] sm:$0xff]
    %v1165 = vld [vmem:[#allocation4 + $0x1e8] sm:$0xff]
    %v1166 = vld [vmem:[#allocation4 + $0x1f0] sm:$0xff]
    %v1167 = vld [vmem:[#allocation4 + $0x1f8] sm:$0xff]
    %v1232 = vunpack.c.l.b16 %v1104
    %v1233 = vunpack.c.h.b16 %v1104
    %v1234 = vunpack.c.l.b16 %v1105
    %v1235 = vunpack.c.h.b16 %v1105
    %v1236 = vunpack.c.l.b16 %v1106
    %v1237 = vunpack.c.h.b16 %v1106
    %v1238 = vunpack.c.l.b16 %v1107
    %v1239 = vunpack.c.h.b16 %v1107
    %v1240 = vunpack.c.l.b16 %v1108
    %v1241 = vunpack.c.h.b16 %v1108
    %v1242 = vunpack.c.l.b16 %v1109
    %v1243 = vunpack.c.h.b16 %v1109
    %v1244 = vunpack.c.l.b16 %v1110
    %v1245 = vunpack.c.h.b16 %v1110
    %v1246 = vunpack.c.l.b16 %v1111
    %v1247 = vunpack.c.h.b16 %v1111
    %v1248 = vunpack.c.l.b16 %v1112
    %v1249 = vunpack.c.h.b16 %v1112
    %v1250 = vunpack.c.l.b16 %v1113
    %v1251 = vunpack.c.h.b16 %v1113
    %v1252 = vunpack.c.l.b16 %v1114
    %v1253 = vunpack.c.h.b16 %v1114
    %v1254 = vunpack.c.l.b16 %v1115
    %v1255 = vunpack.c.h.b16 %v1115
    %v1256 = vunpack.c.l.b16 %v1116
    %v1257 = vunpack.c.h.b16 %v1116
    %v1258 = vunpack.c.l.b16 %v1117
    %v1259 = vunpack.c.h.b16 %v1117
    %v1260 = vunpack.c.l.b16 %v1118
    %v1261 = vunpack.c.h.b16 %v1118
    %v1262 = vunpack.c.l.b16 %v1119
    %v1263 = vunpack.c.h.b16 %v1119
    %v1264 = vunpack.c.l.b16 %v1120
    %v1265 = vunpack.c.h.b16 %v1120
    %v1266 = vunpack.c.l.b16 %v1121
    %v1267 = vunpack.c.h.b16 %v1121
    %v1268 = vunpack.c.l.b16 %v1122
    %v1269 = vunpack.c.h.b16 %v1122
    %v1270 = vunpack.c.l.b16 %v1123
    %v1271 = vunpack.c.h.b16 %v1123
    %v1272 = vunpack.c.l.b16 %v1124
    %v1273 = vunpack.c.h.b16 %v1124
    %v1274 = vunpack.c.l.b16 %v1125
    %v1275 = vunpack.c.h.b16 %v1125
    %v1276 = vunpack.c.l.b16 %v1126
    %v1277 = vunpack.c.h.b16 %v1126
    %v1278 = vunpack.c.l.b16 %v1127
    %v1279 = vunpack.c.h.b16 %v1127
    %v1280 = vunpack.c.l.b16 %v1128
    %v1281 = vunpack.c.h.b16 %v1128
    %v1282 = vunpack.c.l.b16 %v1129
    %v1283 = vunpack.c.h.b16 %v1129
    %v1284 = vunpack.c.l.b16 %v1130
    %v1285 = vunpack.c.h.b16 %v1130
    %v1286 = vunpack.c.l.b16 %v1131
    %v1287 = vunpack.c.h.b16 %v1131
    %v1288 = vunpack.c.l.b16 %v1132
    %v1289 = vunpack.c.h.b16 %v1132
    %v1290 = vunpack.c.l.b16 %v1133
    %v1291 = vunpack.c.h.b16 %v1133
    %v1292 = vunpack.c.l.b16 %v1134
    %v1293 = vunpack.c.h.b16 %v1134
    %v1294 = vunpack.c.l.b16 %v1135
    %v1295 = vunpack.c.h.b16 %v1135
    %v1296 = vunpack.c.l.b16 %v1136
    %v1297 = vunpack.c.h.b16 %v1136
    %v1298 = vunpack.c.l.b16 %v1137
    %v1299 = vunpack.c.h.b16 %v1137
    %v1300 = vunpack.c.l.b16 %v1138
    %v1301 = vunpack.c.h.b16 %v1138
    %v1302 = vunpack.c.l.b16 %v1139
    %v1303 = vunpack.c.h.b16 %v1139
    %v1304 = vunpack.c.l.b16 %v1140
    %v1305 = vunpack.c.h.b16 %v1140
    %v1306 = vunpack.c.l.b16 %v1141
    %v1307 = vunpack.c.h.b16 %v1141
    %v1308 = vunpack.c.l.b16 %v1142
    %v1309 = vunpack.c.h.b16 %v1142
    %v1310 = vunpack.c.l.b16 %v1143
    %v1311 = vunpack.c.h.b16 %v1143
    %v1312 = vunpack.c.l.b16 %v1144
    %v1313 = vunpack.c.h.b16 %v1144
    %v1314 = vunpack.c.l.b16 %v1145
    %v1315 = vunpack.c.h.b16 %v1145
    %v1316 = vunpack.c.l.b16 %v1146
    %v1317 = vunpack.c.h.b16 %v1146
    %v1318 = vunpack.c.l.b16 %v1147
    %v1319 = vunpack.c.h.b16 %v1147
    %v1320 = vunpack.c.l.b16 %v1148
    %v1321 = vunpack.c.h.b16 %v1148
    %v1322 = vunpack.c.l.b16 %v1149
    %v1323 = vunpack.c.h.b16 %v1149
    %v1324 = vunpack.c.l.b16 %v1150
    %v1325 = vunpack.c.h.b16 %v1150
    %v1326 = vunpack.c.l.b16 %v1151
    %v1327 = vunpack.c.h.b16 %v1151
    %v1328 = vunpack.c.l.b16 %v1152
    %v1329 = vunpack.c.h.b16 %v1152
    %v1330 = vunpack.c.l.b16 %v1153
    %v1331 = vunpack.c.h.b16 %v1153
    %v1332 = vunpack.c.l.b16 %v1154
    %v1333 = vunpack.c.h.b16 %v1154
    %v1334 = vunpack.c.l.b16 %v1155
    %v1335 = vunpack.c.h.b16 %v1155
    %v1336 = vunpack.c.l.b16 %v1156
    %v1337 = vunpack.c.h.b16 %v1156
    %v1338 = vunpack.c.l.b16 %v1157
    %v1339 = vunpack.c.h.b16 %v1157
    %v1340 = vunpack.c.l.b16 %v1158
    %v1341 = vunpack.c.h.b16 %v1158
    %v1342 = vunpack.c.l.b16 %v1159
    %v1343 = vunpack.c.h.b16 %v1159
    %v1344 = vunpack.c.l.b16 %v1160
    %v1345 = vunpack.c.h.b16 %v1160
    %v1346 = vunpack.c.l.b16 %v1161
    %v1347 = vunpack.c.h.b16 %v1161
    %v1348 = vunpack.c.l.b16 %v1162
    %v1349 = vunpack.c.h.b16 %v1162
    %v1350 = vunpack.c.l.b16 %v1163
    %v1351 = vunpack.c.h.b16 %v1163
    %v1352 = vunpack.c.l.b16 %v1164
    %v1353 = vunpack.c.h.b16 %v1164
    %v1354 = vunpack.c.l.b16 %v1165
    %v1355 = vunpack.c.h.b16 %v1165
    %v1356 = vunpack.c.l.b16 %v1166
    %v1357 = vunpack.c.h.b16 %v1166
    %v1358 = vunpack.c.l.b16 %v1167
    %v1359 = vunpack.c.h.b16 %v1167
    %v1360 = vpack.c.b16 %v1234, %v1232
    %v1361 = vpack.c.b16 %v1235, %v1233
    %v1362 = vpack.c.b16 %v1238, %v1236
    %v1363 = vpack.c.b16 %v1239, %v1237
    %v1364 = vpack.c.b16 %v1242, %v1240
    %v1365 = vpack.c.b16 %v1243, %v1241
    %v1366 = vpack.c.b16 %v1246, %v1244
    %v1367 = vpack.c.b16 %v1247, %v1245
    %v1368 = vpack.c.b16 %v1250, %v1248
    %v1369 = vpack.c.b16 %v1251, %v1249
    %v1370 = vpack.c.b16 %v1254, %v1252
    %v1371 = vpack.c.b16 %v1255, %v1253
    %v1372 = vpack.c.b16 %v1258, %v1256
    %v1373 = vpack.c.b16 %v1259, %v1257
    %v1374 = vpack.c.b16 %v1262, %v1260
    %v1375 = vpack.c.b16 %v1263, %v1261
    %v1376 = vpack.c.b16 %v1266, %v1264
    %v1377 = vpack.c.b16 %v1267, %v1265
    %v1378 = vpack.c.b16 %v1270, %v1268
    %v1379 = vpack.c.b16 %v1271, %v1269
    %v1380 = vpack.c.b16 %v1274, %v1272
    %v1381 = vpack.c.b16 %v1275, %v1273
    %v1382 = vpack.c.b16 %v1278, %v1276
    %v1383 = vpack.c.b16 %v1279, %v1277
    %v1384 = vpack.c.b16 %v1282, %v1280
    %v1385 = vpack.c.b16 %v1283, %v1281
    %v1386 = vpack.c.b16 %v1286, %v1284
    %v1387 = vpack.c.b16 %v1287, %v1285
    %v1388 = vpack.c.b16 %v1290, %v1288
    %v1389 = vpack.c.b16 %v1291, %v1289
    %v1390 = vpack.c.b16 %v1294, %v1292
    %v1391 = vpack.c.b16 %v1295, %v1293
    %v1392 = vpack.c.b16 %v1298, %v1296
    %v1393 = vpack.c.b16 %v1299, %v1297
    %v1394 = vpack.c.b16 %v1302, %v1300
    %v1395 = vpack.c.b16 %v1303, %v1301
    %v1396 = vpack.c.b16 %v1306, %v1304
    %v1397 = vpack.c.b16 %v1307, %v1305
    %v1398 = vpack.c.b16 %v1310, %v1308
    %v1399 = vpack.c.b16 %v1311, %v1309
    %v1400 = vpack.c.b16 %v1314, %v1312
    %v1401 = vpack.c.b16 %v1315, %v1313
    %v1402 = vpack.c.b16 %v1318, %v1316
    %v1403 = vpack.c.b16 %v1319, %v1317
    %v1404 = vpack.c.b16 %v1322, %v1320
    %v1405 = vpack.c.b16 %v1323, %v1321
    %v1406 = vpack.c.b16 %v1326, %v1324
    %v1407 = vpack.c.b16 %v1327, %v1325
    %v1408 = vpack.c.b16 %v1330, %v1328
    %v1409 = vpack.c.b16 %v1331, %v1329
    %v1410 = vpack.c.b16 %v1334, %v1332
    %v1411 = vpack.c.b16 %v1335, %v1333
    %v1412 = vpack.c.b16 %v1338, %v1336
    %v1413 = vpack.c.b16 %v1339, %v1337
    %v1414 = vpack.c.b16 %v1342, %v1340
    %v1415 = vpack.c.b16 %v1343, %v1341
    %v1416 = vpack.c.b16 %v1346, %v1344
    %v1417 = vpack.c.b16 %v1347, %v1345
    %v1418 = vpack.c.b16 %v1350, %v1348
    %v1419 = vpack.c.b16 %v1351, %v1349
    %v1420 = vpack.c.b16 %v1354, %v1352
    %v1421 = vpack.c.b16 %v1355, %v1353
    %v1422 = vpack.c.b16 %v1358, %v1356
    %v1423 = vpack.c.b16 %v1359, %v1357
    %1488 = vmatpush.bf16.msra.mxu0 %v1374
    %1489 = vmatpush.bf16.msra.mxu0 %v1372
    %1490 = vmatpush.bf16.msra.mxu0 %v1370
    %1491 = vmatpush.bf16.msra.mxu0 %v1368
    %1492 = vmatpush.bf16.msra.mxu0 %v1366
    %1493 = vmatpush.bf16.msra.mxu0 %v1364
    %1494 = vmatpush.bf16.msra.mxu0 %v1362
    %1495 = vmatpush.bf16.msra.mxu0 %v1360
    %1496 = vmatmul.bf16.gmra.mxu0 %v1100
    %v1497 = vpop.f32.mrf.mxu0
    %v1498 = vadd.f32 0.0, %v1497
    %v1499 = vpop.f32.mrf.mxu0
    %1500 = vdwg.mxu0
    %1501 = vmatpush.bf16.msra.mxu0 %v1390
    %1502 = vmatpush.bf16.msra.mxu0 %v1388
    %1503 = vmatpush.bf16.msra.mxu0 %v1386
    %1504 = vmatpush.bf16.msra.mxu0 %v1384
    %1505 = vmatpush.bf16.msra.mxu0 %v1382
    %1506 = vmatpush.bf16.msra.mxu0 %v1380
    %1507 = vmatpush.bf16.msra.mxu0 %v1378
    %1508 = vmatpush.bf16.msra.mxu0 %v1376
    %1509 = vmatmul.bf16.gmra.mxu0 %v1101
    %v1510 = vpop.f32.mrf.mxu0
    %v1511 = vadd.f32 %v1498, %v1510
    %v1512 = vpop.f32.mrf.mxu0
    %1513 = vdwg.mxu0
    %1514 = vmatpush.bf16.msra.mxu0 %v1406
    %1515 = vmatpush.bf16.msra.mxu0 %v1404
    %1516 = vmatpush.bf16.msra.mxu0 %v1402
    %1517 = vmatpush.bf16.msra.mxu0 %v1400
    %1518 = vmatpush.bf16.msra.mxu0 %v1398
    %1519 = vmatpush.bf16.msra.mxu0 %v1396
    %1520 = vmatpush.bf16.msra.mxu0 %v1394
    %1521 = vmatpush.bf16.msra.mxu0 %v1392
    %1522 = vmatmul.bf16.gmra.mxu0 %v1102
    %v1523 = vpop.f32.mrf.mxu0
    %v1524 = vadd.f32 %v1511, %v1523
    %v1525 = vpop.f32.mrf.mxu0
    %1526 = vdwg.mxu0
    %1527 = vmatpush.bf16.msra.mxu0 %v1422
    %1528 = vmatpush.bf16.msra.mxu0 %v1420
    %1529 = vmatpush.bf16.msra.mxu0 %v1418
    %1530 = vmatpush.bf16.msra.mxu0 %v1416
    %1531 = vmatpush.bf16.msra.mxu0 %v1414
    %1532 = vmatpush.bf16.msra.mxu0 %v1412
    %1533 = vmatpush.bf16.msra.mxu0 %v1410
    %1534 = vmatpush.bf16.msra.mxu0 %v1408
    %1535 = vmatmul.bf16.gmra.mxu0 %v1103
    %v1536 = vpop.f32.mrf.mxu0
    %v1537 = vadd.f32 %v1524, %v1536
    %v1538 = vpop.f32.mrf.mxu0
    %1539 = vdwg.mxu0
    %1540 = vmatpush.bf16.msra.mxu0 %v1375
    %1541 = vmatpush.bf16.msra.mxu0 %v1373
    %1542 = vmatpush.bf16.msra.mxu0 %v1371
    %1543 = vmatpush.bf16.msra.mxu0 %v1369
    %1544 = vmatpush.bf16.msra.mxu0 %v1367
    %1545 = vmatpush.bf16.msra.mxu0 %v1365
    %1546 = vmatpush.bf16.msra.mxu0 %v1363
    %1547 = vmatpush.bf16.msra.mxu0 %v1361
    %1548 = vmatmul.bf16.gmra.mxu0 %v1100
    %v1549 = vpop.f32.mrf.mxu0
    %v1550 = vadd.f32 0.0, %v1549
    %v1551 = vpop.f32.mrf.mxu0
    %1552 = vdwg.mxu0
    %1553 = vmatpush.bf16.msra.mxu0 %v1391
    %1554 = vmatpush.bf16.msra.mxu0 %v1389
    %1555 = vmatpush.bf16.msra.mxu0 %v1387
    %1556 = vmatpush.bf16.msra.mxu0 %v1385
    %1557 = vmatpush.bf16.msra.mxu0 %v1383
    %1558 = vmatpush.bf16.msra.mxu0 %v1381
    %1559 = vmatpush.bf16.msra.mxu0 %v1379
    %1560 = vmatpush.bf16.msra.mxu0 %v1377
    %1561 = vmatmul.bf16.gmra.mxu0 %v1101
    %v1562 = vpop.f32.mrf.mxu0
    %v1563 = vadd.f32 %v1550, %v1562
    %v1564 = vpop.f32.mrf.mxu0
    %1565 = vdwg.mxu0
    %1566 = vmatpush.bf16.msra.mxu0 %v1407
    %1567 = vmatpush.bf16.msra.mxu0 %v1405
    %1568 = vmatpush.bf16.msra.mxu0 %v1403
    %1569 = vmatpush.bf16.msra.mxu0 %v1401
    %1570 = vmatpush.bf16.msra.mxu0 %v1399
    %1571 = vmatpush.bf16.msra.mxu0 %v1397
    %1572 = vmatpush.bf16.msra.mxu0 %v1395
    %1573 = vmatpush.bf16.msra.mxu0 %v1393
    %1574 = vmatmul.bf16.gmra.mxu0 %v1102
    %v1575 = vpop.f32.mrf.mxu0
    %v1576 = vadd.f32 %v1563, %v1575
    %v1577 = vpop.f32.mrf.mxu0
    %1578 = vdwg.mxu0
    %1579 = vmatpush.bf16.msra.mxu0 %v1423
    %1580 = vmatpush.bf16.msra.mxu0 %v1421
    %1581 = vmatpush.bf16.msra.mxu0 %v1419
    %1582 = vmatpush.bf16.msra.mxu0 %v1417
    %1583 = vmatpush.bf16.msra.mxu0 %v1415
    %1584 = vmatpush.bf16.msra.mxu0 %v1413
    %1585 = vmatpush.bf16.msra.mxu0 %v1411
    %1586 = vmatpush.bf16.msra.mxu0 %v1409
    %1587 = vmatmul.bf16.gmra.mxu0 %v1103
    %v1588 = vpop.f32.mrf.mxu0
    %v1589 = vadd.f32 %v1576, %v1588
    %v1590 = vpop.f32.mrf.mxu0
    %1591 = vdwg.mxu0
    %v1592 = vxor.u32 %v1537, 2147483648
    %v1593 = vxor.u32 %v1589, 2147483648
    %v1594 = vmul.f32 %v1592, 1.442695
    %v1595 = vpow.pop %v1594
    %v1596 = vmul.f32 %v1593, 1.442695
    %v1597 = vpow.pop %v1596
    %v1598 = vadd.f32 %v1595, 1.0
    %v1599 = vadd.f32 %v1597, 1.0
    %v1600 = vrcp.pop %v1598
    %v1601 = vmul.f32 %v1598, %v1600
    %v1602 = vsub.f32 1.0, %v1601
    %v1603 = vmul.f32 %v1600, %v1602
    %v1604 = vadd.f32 %v1600, %v1603
    %vm1605 = vweird.f32 %v1598
    %vm1606 = vweird.f32 %v1600
    %vm1607 = vmor %vm1605, %vm1606
    %v1608 = vsel %vm1607, %v1600, %v1604
    %v1609 = vand.u32 2147483647, %v1598
    %vm1610 = vcmp.eq.f32.partialorder %v1609, 8.507059e+37
    %v1611 = vand.u32 %v1598, 2147483648
    %v1612 = vor.u32 1.1754944e-38, %v1611
    %v1613 = vsel %vm1610, %v1612, %v1608
    %v1614 = vmul.f32 1.0, %v1613
    %v1615 = vrcp.pop %v1599
    %v1616 = vmul.f32 %v1599, %v1615
    %v1617 = vsub.f32 1.0, %v1616
    %v1618 = vmul.f32 %v1615, %v1617
    %v1619 = vadd.f32 %v1615, %v1618
    %vm1620 = vweird.f32 %v1599
    %vm1621 = vweird.f32 %v1615
    %vm1622 = vmor %vm1620, %vm1621
    %v1623 = vsel %vm1622, %v1615, %v1619
    %v1624 = vand.u32 2147483647, %v1599
    %vm1625 = vcmp.eq.f32.partialorder %v1624, 8.507059e+37
    %v1626 = vand.u32 %v1599, 2147483648
    %v1627 = vor.u32 1.1754944e-38, %v1626
    %v1628 = vsel %vm1625, %v1627, %v1623
    %v1629 = vmul.f32 1.0, %v1628
    %v1630 = vld [vmem:[%s7] sm:$0xf]
    %v1631 = vld [vmem:[%s7 + $0x8] sm:$0xf]
    %v1632 = vperm.slane %v1614, 0
    %v1633 = vperm.slane %v1629, 0
    %v1634 = vmul.f32 %v1060, %v1632
    %v1635 = vmul.f32 %v1061, %v1633
    %v1636 = vadd.f32 %v1630, %v1634
    %v1637 = vadd.f32 %v1631, %v1635
    %1638 = vst [vmem:[%s7] sm:$0xf] %v1636
    %1639 = vst [vmem:[%s7 + $0x8] sm:$0xf] %v1637
    %v1640 = vld [vmem:[%s0] sm:$0xf0]
    %v1641 = vld [vmem:[%s0 + $0x8] sm:$0xf0]
    %v1644 = vrot.slane %v1640, 4
    %v1645 = vrot.slane %v1641, 4
    %v1648 = vsel %vm1062, %v1644, 0.0
    %v1649 = vrot.slane %v1648, 4
    %v1650 = vadd.f32 %v1648, %v1649
    %v1651 = vrot.slane %v1650, 2
    %v1652 = vadd.f32 %v1650, %v1651
    %v1653 = vrot.slane %v1652, 1
    %v1654 = vadd.f32 %v1652, %v1653
    %v1655 = vsel %vm1062, %v1645, 0.0
    %v1656 = vrot.slane %v1655, 4
    %v1657 = vadd.f32 %v1655, %v1656
    %v1658 = vrot.slane %v1657, 2
    %v1659 = vadd.f32 %v1657, %v1658
    %v1660 = vrot.slane %v1659, 1
    %v1661 = vadd.f32 %v1659, %v1660
    %v1662 = vmul.f32 %v1654, %v1083
    %v1663 = vmul.f32 %v1661, %v1083
    %vm1664 = vcmask 1047556
    %v1665 = vsel %vm1664, %v1640, -inf
    %v1666 = vrot.slane %v1665, 4
    %v1667 = vmax.f32 %v1665, %v1666
    %v1668 = vrot.slane %v1667, 2
    %v1669 = vmax.f32 %v1667, %v1668
    %v1670 = vrot.slane %v1669, 1
    %v1671 = vmax.f32 %v1669, %v1670
    %v1672 = vsel %vm1664, %v1641, -inf
    %v1673 = vrot.slane %v1672, 4
    %v1674 = vmax.f32 %v1672, %v1673
    %v1675 = vrot.slane %v1674, 2
    %v1676 = vmax.f32 %v1674, %v1675
    %v1677 = vrot.slane %v1676, 1
    %v1678 = vmax.f32 %v1676, %v1677
    %v1679 = vpack.c.bf16 %v1662, %v1662
    %v1680 = vpack.c.bf16 %v1663, %v1663
    %v1681 = vpack.c.bf16 %v1671, %v1671
    %v1682 = vpack.c.bf16 %v1678, %v1678
    %v1683 = vld [vmem:[#allocation4] sm:$0xff]
    %v1684 = vld [vmem:[#allocation4 + $0x8] sm:$0xff]
    %v1685 = vld [vmem:[#allocation4 + $0x10] sm:$0xff]
    %v1686 = vld [vmem:[#allocation4 + $0x18] sm:$0xff]
    %v1687 = vld [vmem:[#allocation4 + $0x20] sm:$0xff]
    %v1688 = vld [vmem:[#allocation4 + $0x28] sm:$0xff]
    %v1689 = vld [vmem:[#allocation4 + $0x30] sm:$0xff]
    %v1690 = vld [vmem:[#allocation4 + $0x38] sm:$0xff]
    %v1691 = vld [vmem:[#allocation4 + $0x40] sm:$0xff]
    %v1692 = vld [vmem:[#allocation4 + $0x48] sm:$0xff]
    %v1693 = vld [vmem:[#allocation4 + $0x50] sm:$0xff]
    %v1694 = vld [vmem:[#allocation4 + $0x58] sm:$0xff]
    %v1695 = vld [vmem:[#allocation4 + $0x60] sm:$0xff]
    %v1696 = vld [vmem:[#allocation4 + $0x68] sm:$0xff]
    %v1697 = vld [vmem:[#allocation4 + $0x70] sm:$0xff]
    %v1698 = vld [vmem:[#allocation4 + $0x78] sm:$0xff]
    %v1699 = vld [vmem:[#allocation4 + $0x80] sm:$0xff]
    %v1700 = vld [vmem:[#allocation4 + $0x88] sm:$0xff]
    %v1701 = vld [vmem:[#allocation4 + $0x90] sm:$0xff]
    %v1702 = vld [vmem:[#allocation4 + $0x98] sm:$0xff]
    %v1703 = vld [vmem:[#allocation4 + $0xa0] sm:$0xff]
    %v1704 = vld [vmem:[#allocation4 + $0xa8] sm:$0xff]
    %v1705 = vld [vmem:[#allocation4 + $0xb0] sm:$0xff]
    %v1706 = vld [vmem:[#allocation4 + $0xb8] sm:$0xff]
    %v1707 = vld [vmem:[#allocation4 + $0xc0] sm:$0xff]
    %v1708 = vld [vmem:[#allocation4 + $0xc8] sm:$0xff]
    %v1709 = vld [vmem:[#allocation4 + $0xd0] sm:$0xff]
    %v1710 = vld [vmem:[#allocation4 + $0xd8] sm:$0xff]
    %v1711 = vld [vmem:[#allocation4 + $0xe0] sm:$0xff]
    %v1712 = vld [vmem:[#allocation4 + $0xe8] sm:$0xff]
    %v1713 = vld [vmem:[#allocation4 + $0xf0] sm:$0xff]
    %v1714 = vld [vmem:[#allocation4 + $0xf8] sm:$0xff]
    %v1715 = vld [vmem:[#allocation4 + $0x100] sm:$0xff]
    %v1716 = vld [vmem:[#allocation4 + $0x108] sm:$0xff]
    %v1717 = vld [vmem:[#allocation4 + $0x110] sm:$0xff]
    %v1718 = vld [vmem:[#allocation4 + $0x118] sm:$0xff]
    %v1719 = vld [vmem:[#allocation4 + $0x120] sm:$0xff]
    %v1720 = vld [vmem:[#allocation4 + $0x128] sm:$0xff]
    %v1721 = vld [vmem:[#allocation4 + $0x130] sm:$0xff]
    %v1722 = vld [vmem:[#allocation4 + $0x138] sm:$0xff]
    %v1723 = vld [vmem:[#allocation4 + $0x140] sm:$0xff]
    %v1724 = vld [vmem:[#allocation4 + $0x148] sm:$0xff]
    %v1725 = vld [vmem:[#allocation4 + $0x150] sm:$0xff]
    %v1726 = vld [vmem:[#allocation4 + $0x158] sm:$0xff]
    %v1727 = vld [vmem:[#allocation4 + $0x160] sm:$0xff]
    %v1728 = vld [vmem:[#allocation4 + $0x168] sm:$0xff]
    %v1729 = vld [vmem:[#allocation4 + $0x170] sm:$0xff]
    %v1730 = vld [vmem:[#allocation4 + $0x178] sm:$0xff]
    %v1731 = vld [vmem:[#allocation4 + $0x180] sm:$0xff]
    %v1732 = vld [vmem:[#allocation4 + $0x188] sm:$0xff]
    %v1733 = vld [vmem:[#allocation4 + $0x190] sm:$0xff]
    %v1734 = vld [vmem:[#allocation4 + $0x198] sm:$0xff]
    %v1735 = vld [vmem:[#allocation4 + $0x1a0] sm:$0xff]
    %v1736 = vld [vmem:[#allocation4 + $0x1a8] sm:$0xff]
    %v1737 = vld [vmem:[#allocation4 + $0x1b0] sm:$0xff]
    %v1738 = vld [vmem:[#allocation4 + $0x1b8] sm:$0xff]
    %v1739 = vld [vmem:[#allocation4 + $0x1c0] sm:$0xff]
    %v1740 = vld [vmem:[#allocation4 + $0x1c8] sm:$0xff]
    %v1741 = vld [vmem:[#allocation4 + $0x1d0] sm:$0xff]
    %v1742 = vld [vmem:[#allocation4 + $0x1d8] sm:$0xff]
    %v1743 = vld [vmem:[#allocation4 + $0x1e0] sm:$0xff]
    %v1744 = vld [vmem:[#allocation4 + $0x1e8] sm:$0xff]
    %v1745 = vld [vmem:[#allocation4 + $0x1f0] sm:$0xff]
    %v1746 = vld [vmem:[#allocation4 + $0x1f8] sm:$0xff]
    %v1811 = vunpack.c.l.b16 %v1683
    %v1812 = vunpack.c.h.b16 %v1683
    %v1813 = vunpack.c.l.b16 %v1684
    %v1814 = vunpack.c.h.b16 %v1684
    %v1815 = vunpack.c.l.b16 %v1685
    %v1816 = vunpack.c.h.b16 %v1685
    %v1817 = vunpack.c.l.b16 %v1686
    %v1818 = vunpack.c.h.b16 %v1686
    %v1819 = vunpack.c.l.b16 %v1687
    %v1820 = vunpack.c.h.b16 %v1687
    %v1821 = vunpack.c.l.b16 %v1688
    %v1822 = vunpack.c.h.b16 %v1688
    %v1823 = vunpack.c.l.b16 %v1689
    %v1824 = vunpack.c.h.b16 %v1689
    %v1825 = vunpack.c.l.b16 %v1690
    %v1826 = vunpack.c.h.b16 %v1690
    %v1827 = vunpack.c.l.b16 %v1691
    %v1828 = vunpack.c.h.b16 %v1691
    %v1829 = vunpack.c.l.b16 %v1692
    %v1830 = vunpack.c.h.b16 %v1692
    %v1831 = vunpack.c.l.b16 %v1693
    %v1832 = vunpack.c.h.b16 %v1693
    %v1833 = vunpack.c.l.b16 %v1694
    %v1834 = vunpack.c.h.b16 %v1694
    %v1835 = vunpack.c.l.b16 %v1695
    %v1836 = vunpack.c.h.b16 %v1695
    %v1837 = vunpack.c.l.b16 %v1696
    %v1838 = vunpack.c.h.b16 %v1696
    %v1839 = vunpack.c.l.b16 %v1697
    %v1840 = vunpack.c.h.b16 %v1697
    %v1841 = vunpack.c.l.b16 %v1698
    %v1842 = vunpack.c.h.b16 %v1698
    %v1843 = vunpack.c.l.b16 %v1699
    %v1844 = vunpack.c.h.b16 %v1699
    %v1845 = vunpack.c.l.b16 %v1700
    %v1846 = vunpack.c.h.b16 %v1700
    %v1847 = vunpack.c.l.b16 %v1701
    %v1848 = vunpack.c.h.b16 %v1701
    %v1849 = vunpack.c.l.b16 %v1702
    %v1850 = vunpack.c.h.b16 %v1702
    %v1851 = vunpack.c.l.b16 %v1703
    %v1852 = vunpack.c.h.b16 %v1703
    %v1853 = vunpack.c.l.b16 %v1704
    %v1854 = vunpack.c.h.b16 %v1704
    %v1855 = vunpack.c.l.b16 %v1705
    %v1856 = vunpack.c.h.b16 %v1705
    %v1857 = vunpack.c.l.b16 %v1706
    %v1858 = vunpack.c.h.b16 %v1706
    %v1859 = vunpack.c.l.b16 %v1707
    %v1860 = vunpack.c.h.b16 %v1707
    %v1861 = vunpack.c.l.b16 %v1708
    %v1862 = vunpack.c.h.b16 %v1708
    %v1863 = vunpack.c.l.b16 %v1709
    %v1864 = vunpack.c.h.b16 %v1709
    %v1865 = vunpack.c.l.b16 %v1710
    %v1866 = vunpack.c.h.b16 %v1710
    %v1867 = vunpack.c.l.b16 %v1711
    %v1868 = vunpack.c.h.b16 %v1711
    %v1869 = vunpack.c.l.b16 %v1712
    %v1870 = vunpack.c.h.b16 %v1712
    %v1871 = vunpack.c.l.b16 %v1713
    %v1872 = vunpack.c.h.b16 %v1713
    %v1873 = vunpack.c.l.b16 %v1714
    %v1874 = vunpack.c.h.b16 %v1714
    %v1875 = vunpack.c.l.b16 %v1715
    %v1876 = vunpack.c.h.b16 %v1715
    %v1877 = vunpack.c.l.b16 %v1716
    %v1878 = vunpack.c.h.b16 %v1716
    %v1879 = vunpack.c.l.b16 %v1717
    %v1880 = vunpack.c.h.b16 %v1717
    %v1881 = vunpack.c.l.b16 %v1718
    %v1882 = vunpack.c.h.b16 %v1718
    %v1883 = vunpack.c.l.b16 %v1719
    %v1884 = vunpack.c.h.b16 %v1719
    %v1885 = vunpack.c.l.b16 %v1720
    %v1886 = vunpack.c.h.b16 %v1720
    %v1887 = vunpack.c.l.b16 %v1721
    %v1888 = vunpack.c.h.b16 %v1721
    %v1889 = vunpack.c.l.b16 %v1722
    %v1890 = vunpack.c.h.b16 %v1722
    %v1891 = vunpack.c.l.b16 %v1723
    %v1892 = vunpack.c.h.b16 %v1723
    %v1893 = vunpack.c.l.b16 %v1724
    %v1894 = vunpack.c.h.b16 %v1724
    %v1895 = vunpack.c.l.b16 %v1725
    %v1896 = vunpack.c.h.b16 %v1725
    %v1897 = vunpack.c.l.b16 %v1726
    %v1898 = vunpack.c.h.b16 %v1726
    %v1899 = vunpack.c.l.b16 %v1727
    %v1900 = vunpack.c.h.b16 %v1727
    %v1901 = vunpack.c.l.b16 %v1728
    %v1902 = vunpack.c.h.b16 %v1728
    %v1903 = vunpack.c.l.b16 %v1729
    %v1904 = vunpack.c.h.b16 %v1729
    %v1905 = vunpack.c.l.b16 %v1730
    %v1906 = vunpack.c.h.b16 %v1730
    %v1907 = vunpack.c.l.b16 %v1731
    %v1908 = vunpack.c.h.b16 %v1731
    %v1909 = vunpack.c.l.b16 %v1732
    %v1910 = vunpack.c.h.b16 %v1732
    %v1911 = vunpack.c.l.b16 %v1733
    %v1912 = vunpack.c.h.b16 %v1733
    %v1913 = vunpack.c.l.b16 %v1734
    %v1914 = vunpack.c.h.b16 %v1734
    %v1915 = vunpack.c.l.b16 %v1735
    %v1916 = vunpack.c.h.b16 %v1735
    %v1917 = vunpack.c.l.b16 %v1736
    %v1918 = vunpack.c.h.b16 %v1736
    %v1919 = vunpack.c.l.b16 %v1737
    %v1920 = vunpack.c.h.b16 %v1737
    %v1921 = vunpack.c.l.b16 %v1738
    %v1922 = vunpack.c.h.b16 %v1738
    %v1923 = vunpack.c.l.b16 %v1739
    %v1924 = vunpack.c.h.b16 %v1739
    %v1925 = vunpack.c.l.b16 %v1740
    %v1926 = vunpack.c.h.b16 %v1740
    %v1927 = vunpack.c.l.b16 %v1741
    %v1928 = vunpack.c.h.b16 %v1741
    %v1929 = vunpack.c.l.b16 %v1742
    %v1930 = vunpack.c.h.b16 %v1742
    %v1931 = vunpack.c.l.b16 %v1743
    %v1932 = vunpack.c.h.b16 %v1743
    %v1933 = vunpack.c.l.b16 %v1744
    %v1934 = vunpack.c.h.b16 %v1744
    %v1935 = vunpack.c.l.b16 %v1745
    %v1936 = vunpack.c.h.b16 %v1745
    %v1937 = vunpack.c.l.b16 %v1746
    %v1938 = vunpack.c.h.b16 %v1746
    %v1939 = vpack.c.b16 %v1813, %v1811
    %v1940 = vpack.c.b16 %v1814, %v1812
    %v1941 = vpack.c.b16 %v1817, %v1815
    %v1942 = vpack.c.b16 %v1818, %v1816
    %v1943 = vpack.c.b16 %v1821, %v1819
    %v1944 = vpack.c.b16 %v1822, %v1820
    %v1945 = vpack.c.b16 %v1825, %v1823
    %v1946 = vpack.c.b16 %v1826, %v1824
    %v1947 = vpack.c.b16 %v1829, %v1827
    %v1948 = vpack.c.b16 %v1830, %v1828
    %v1949 = vpack.c.b16 %v1833, %v1831
    %v1950 = vpack.c.b16 %v1834, %v1832
    %v1951 = vpack.c.b16 %v1837, %v1835
    %v1952 = vpack.c.b16 %v1838, %v1836
    %v1953 = vpack.c.b16 %v1841, %v1839
    %v1954 = vpack.c.b16 %v1842, %v1840
    %v1955 = vpack.c.b16 %v1845, %v1843
    %v1956 = vpack.c.b16 %v1846, %v1844
    %v1957 = vpack.c.b16 %v1849, %v1847
    %v1958 = vpack.c.b16 %v1850, %v1848
    %v1959 = vpack.c.b16 %v1853, %v1851
    %v1960 = vpack.c.b16 %v1854, %v1852
    %v1961 = vpack.c.b16 %v1857, %v1855
    %v1962 = vpack.c.b16 %v1858, %v1856
    %v1963 = vpack.c.b16 %v1861, %v1859
    %v1964 = vpack.c.b16 %v1862, %v1860
    %v1965 = vpack.c.b16 %v1865, %v1863
    %v1966 = vpack.c.b16 %v1866, %v1864
    %v1967 = vpack.c.b16 %v1869, %v1867
    %v1968 = vpack.c.b16 %v1870, %v1868
    %v1969 = vpack.c.b16 %v1873, %v1871
    %v1970 = vpack.c.b16 %v1874, %v1872
    %v1971 = vpack.c.b16 %v1877, %v1875
    %v1972 = vpack.c.b16 %v1878, %v1876
    %v1973 = vpack.c.b16 %v1881, %v1879
    %v1974 = vpack.c.b16 %v1882, %v1880
    %v1975 = vpack.c.b16 %v1885, %v1883
    %v1976 = vpack.c.b16 %v1886, %v1884
    %v1977 = vpack.c.b16 %v1889, %v1887
    %v1978 = vpack.c.b16 %v1890, %v1888
    %v1979 = vpack.c.b16 %v1893, %v1891
    %v1980 = vpack.c.b16 %v1894, %v1892
    %v1981 = vpack.c.b16 %v1897, %v1895
    %v1982 = vpack.c.b16 %v1898, %v1896
    %v1983 = vpack.c.b16 %v1901, %v1899
    %v1984 = vpack.c.b16 %v1902, %v1900
    %v1985 = vpack.c.b16 %v1905, %v1903
    %v1986 = vpack.c.b16 %v1906, %v1904
    %v1987 = vpack.c.b16 %v1909, %v1907
    %v1988 = vpack.c.b16 %v1910, %v1908
    %v1989 = vpack.c.b16 %v1913, %v1911
    %v1990 = vpack.c.b16 %v1914, %v1912
    %v1991 = vpack.c.b16 %v1917, %v1915
    %v1992 = vpack.c.b16 %v1918, %v1916
    %v1993 = vpack.c.b16 %v1921, %v1919
    %v1994 = vpack.c.b16 %v1922, %v1920
    %v1995 = vpack.c.b16 %v1925, %v1923
    %v1996 = vpack.c.b16 %v1926, %v1924
    %v1997 = vpack.c.b16 %v1929, %v1927
    %v1998 = vpack.c.b16 %v1930, %v1928
    %v1999 = vpack.c.b16 %v1933, %v1931
    %v2000 = vpack.c.b16 %v1934, %v1932
    %v2001 = vpack.c.b16 %v1937, %v1935
    %v2002 = vpack.c.b16 %v1938, %v1936
    %2067 = vmatpush.bf16.msra.mxu0 %v1953
    %2068 = vmatpush.bf16.msra.mxu0 %v1951
    %2069 = vmatpush.bf16.msra.mxu0 %v1949
    %2070 = vmatpush.bf16.msra.mxu0 %v1947
    %2071 = vmatpush.bf16.msra.mxu0 %v1945
    %2072 = vmatpush.bf16.msra.mxu0 %v1943
    %2073 = vmatpush.bf16.msra.mxu0 %v1941
    %2074 = vmatpush.bf16.msra.mxu0 %v1939
    %2075 = vmatmul.bf16.gmra.mxu0 %v1679
    %v2076 = vpop.f32.mrf.mxu0
    %v2077 = vadd.f32 0.0, %v2076
    %v2078 = vpop.f32.mrf.mxu0
    %2079 = vdwg.mxu0
    %2080 = vmatpush.bf16.msra.mxu0 %v1969
    %2081 = vmatpush.bf16.msra.mxu0 %v1967
    %2082 = vmatpush.bf16.msra.mxu0 %v1965
    %2083 = vmatpush.bf16.msra.mxu0 %v1963
    %2084 = vmatpush.bf16.msra.mxu0 %v1961
    %2085 = vmatpush.bf16.msra.mxu0 %v1959
    %2086 = vmatpush.bf16.msra.mxu0 %v1957
    %2087 = vmatpush.bf16.msra.mxu0 %v1955
    %2088 = vmatmul.bf16.gmra.mxu0 %v1680
    %v2089 = vpop.f32.mrf.mxu0
    %v2090 = vadd.f32 %v2077, %v2089
    %v2091 = vpop.f32.mrf.mxu0
    %2092 = vdwg.mxu0
    %2093 = vmatpush.bf16.msra.mxu0 %v1985
    %2094 = vmatpush.bf16.msra.mxu0 %v1983
    %2095 = vmatpush.bf16.msra.mxu0 %v1981
    %2096 = vmatpush.bf16.msra.mxu0 %v1979
    %2097 = vmatpush.bf16.msra.mxu0 %v1977
    %2098 = vmatpush.bf16.msra.mxu0 %v1975
    %2099 = vmatpush.bf16.msra.mxu0 %v1973
    %2100 = vmatpush.bf16.msra.mxu0 %v1971
    %2101 = vmatmul.bf16.gmra.mxu0 %v1681
    %v2102 = vpop.f32.mrf.mxu0
    %v2103 = vadd.f32 %v2090, %v2102
    %v2104 = vpop.f32.mrf.mxu0
    %2105 = vdwg.mxu0
    %2106 = vmatpush.bf16.msra.mxu0 %v2001
    %2107 = vmatpush.bf16.msra.mxu0 %v1999
    %2108 = vmatpush.bf16.msra.mxu0 %v1997
    %2109 = vmatpush.bf16.msra.mxu0 %v1995
    %2110 = vmatpush.bf16.msra.mxu0 %v1993
    %2111 = vmatpush.bf16.msra.mxu0 %v1991
    %2112 = vmatpush.bf16.msra.mxu0 %v1989
    %2113 = vmatpush.bf16.msra.mxu0 %v1987
    %2114 = vmatmul.bf16.gmra.mxu0 %v1682
    %v2115 = vpop.f32.mrf.mxu0
    %v2116 = vadd.f32 %v2103, %v2115
    %v2117 = vpop.f32.mrf.mxu0
    %2118 = vdwg.mxu0
    %2119 = vmatpush.bf16.msra.mxu0 %v1954
    %2120 = vmatpush.bf16.msra.mxu0 %v1952
    %2121 = vmatpush.bf16.msra.mxu0 %v1950
    %2122 = vmatpush.bf16.msra.mxu0 %v1948
    %2123 = vmatpush.bf16.msra.mxu0 %v1946
    %2124 = vmatpush.bf16.msra.mxu0 %v1944
    %2125 = vmatpush.bf16.msra.mxu0 %v1942
    %2126 = vmatpush.bf16.msra.mxu0 %v1940
    %2127 = vmatmul.bf16.gmra.mxu0 %v1679
    %v2128 = vpop.f32.mrf.mxu0
    %v2129 = vadd.f32 0.0, %v2128
    %v2130 = vpop.f32.mrf.mxu0
    %2131 = vdwg.mxu0
    %2132 = vmatpush.bf16.msra.mxu0 %v1970
    %2133 = vmatpush.bf16.msra.mxu0 %v1968
    %2134 = vmatpush.bf16.msra.mxu0 %v1966
    %2135 = vmatpush.bf16.msra.mxu0 %v1964
    %2136 = vmatpush.bf16.msra.mxu0 %v1962
    %2137 = vmatpush.bf16.msra.mxu0 %v1960
    %2138 = vmatpush.bf16.msra.mxu0 %v1958
    %2139 = vmatpush.bf16.msra.mxu0 %v1956
    %2140 = vmatmul.bf16.gmra.mxu0 %v1680
    %v2141 = vpop.f32.mrf.mxu0
    %v2142 = vadd.f32 %v2129, %v2141
    %v2143 = vpop.f32.mrf.mxu0
    %2144 = vdwg.mxu0
    %2145 = vmatpush.bf16.msra.mxu0 %v1986
    %2146 = vmatpush.bf16.msra.mxu0 %v1984
    %2147 = vmatpush.bf16.msra.mxu0 %v1982
    %2148 = vmatpush.bf16.msra.mxu0 %v1980
    %2149 = vmatpush.bf16.msra.mxu0 %v1978
    %2150 = vmatpush.bf16.msra.mxu0 %v1976
    %2151 = vmatpush.bf16.msra.mxu0 %v1974
    %2152 = vmatpush.bf16.msra.mxu0 %v1972
    %2153 = vmatmul.bf16.gmra.mxu0 %v1681
    %v2154 = vpop.f32.mrf.mxu0
    %v2155 = vadd.f32 %v2142, %v2154
    %v2156 = vpop.f32.mrf.mxu0
    %2157 = vdwg.mxu0
    %2158 = vmatpush.bf16.msra.mxu0 %v2002
    %2159 = vmatpush.bf16.msra.mxu0 %v2000
    %2160 = vmatpush.bf16.msra.mxu0 %v1998
    %2161 = vmatpush.bf16.msra.mxu0 %v1996
    %2162 = vmatpush.bf16.msra.mxu0 %v1994
    %2163 = vmatpush.bf16.msra.mxu0 %v1992
    %2164 = vmatpush.bf16.msra.mxu0 %v1990
    %2165 = vmatpush.bf16.msra.mxu0 %v1988
    %2166 = vmatmul.bf16.gmra.mxu0 %v1682
    %v2167 = vpop.f32.mrf.mxu0
    %v2168 = vadd.f32 %v2155, %v2167
    %v2169 = vpop.f32.mrf.mxu0
    %2170 = vdwg.mxu0
    %v2171 = vxor.u32 %v2116, 2147483648
    %v2172 = vxor.u32 %v2168, 2147483648
    %v2173 = vmul.f32 %v2171, 1.442695
    %v2174 = vpow.pop %v2173
    %v2175 = vmul.f32 %v2172, 1.442695
    %v2176 = vpow.pop %v2175
    %v2177 = vadd.f32 %v2174, 1.0
    %v2178 = vadd.f32 %v2176, 1.0
    %v2179 = vrcp.pop %v2177
    %v2180 = vmul.f32 %v2177, %v2179
    %v2181 = vsub.f32 1.0, %v2180
    %v2182 = vmul.f32 %v2179, %v2181
    %v2183 = vadd.f32 %v2179, %v2182
    %vm2184 = vweird.f32 %v2177
    %vm2185 = vweird.f32 %v2179
    %vm2186 = vmor %vm2184, %vm2185
    %v2187 = vsel %vm2186, %v2179, %v2183
    %v2188 = vand.u32 2147483647, %v2177
    %vm2189 = vcmp.eq.f32.partialorder %v2188, 8.507059e+37
    %v2190 = vand.u32 %v2177, 2147483648
    %v2191 = vor.u32 1.1754944e-38, %v2190
    %v2192 = vsel %vm2189, %v2191, %v2187
    %v2193 = vmul.f32 1.0, %v2192
    %v2194 = vrcp.pop %v2178
    %v2195 = vmul.f32 %v2178, %v2194
    %v2196 = vsub.f32 1.0, %v2195
    %v2197 = vmul.f32 %v2194, %v2196
    %v2198 = vadd.f32 %v2194, %v2197
    %vm2199 = vweird.f32 %v2178
    %vm2200 = vweird.f32 %v2194
    %vm2201 = vmor %vm2199, %vm2200
    %v2202 = vsel %vm2201, %v2194, %v2198
    %v2203 = vand.u32 2147483647, %v2178
    %vm2204 = vcmp.eq.f32.partialorder %v2203, 8.507059e+37
    %v2205 = vand.u32 %v2178, 2147483648
    %v2206 = vor.u32 1.1754944e-38, %v2205
    %v2207 = vsel %vm2204, %v2206, %v2202
    %v2208 = vmul.f32 1.0, %v2207
    %v2209 = vld [vmem:[%s7] sm:$0xf0]
    %v2210 = vld [vmem:[%s7 + $0x8] sm:$0xf0]
    %v2211 = vperm.slane %v2193, 0
    %v2212 = vperm.slane %v2208, 0
    %v2213 = vmul.f32 %v1640, %v2211
    %v2214 = vmul.f32 %v1641, %v2212
    %v2215 = vadd.f32 %v2209, %v2213
    %v2216 = vadd.f32 %v2210, %v2214
    %2217 = vst [vmem:[%s7] sm:$0xf0] %v2215
    %2218 = vst [vmem:[%s7 + $0x8] sm:$0xf0] %v2216
    // Predicated region
    $region38: #{fsa_forward.1} parent=1 // pred_check
      _
    $region39: #{fsa_forward.1} parent=1 // pred_check_branch
      %2220 = sbr.rel (0) target = $region41
    $region40: #{fsa_forward.1} parent=1 // pred_region
      _
    $region41: #{fsa_forward.1} parent=1 // pred_fallthru
      _
    // Predicated region
    $region42: #{fsa_forward.1} parent=1 // pred_check
      _
    $region43: #{fsa_forward.1} parent=1 // pred_check_branch
      %2222 = sbr.rel (0) target = $region45
    $region44: #{fsa_forward.1} parent=1 // pred_region
      _
    $region45: #{fsa_forward.1} parent=1 // pred_fallthru
      _
    %2223 = vsyncpa [#allocation3], 1
    %2224 = vsyncpa [#allocation5], 1

</llo_original>
